<compile_context>
chip_gen: v6e
topology: v6e:2x2x1
jax: 0.10.0
libtpu: 0.0.40
codegen_flags: <defaults>
</compile_context>

<pallas_src>
import numpy as np

import jax
import jax.numpy as jnp
from jax.experimental import pallas as pl
from jax.experimental.pallas import tpu as pltpu


def _silu(v):
    # Elementwise math kept in f32 (v5e VPU/EUP have no bf16 support).
    return v * jax.nn.sigmoid(v)


def grid_atomwise_kernel(x_ref, tg_ref, fgT_ref, w1_ref, w2_ref, w3_ref, o_ref):
    # x_ref   : (TM*Kp, C)  coefficients of TM atoms, K zero-padded to Kp
    # tg_ref  : (G, Kp)     flattened to_grid matrix
    # fgT_ref : (Kp, G)     flattened from_grid matrix (pre-transposed)
    # w1/w2/w3: (C,H) (H,H) (H,C) grid_mlp weights (no bias)
    # o_ref   : (TM*Kp, C)
    kp = fgT_ref.shape[0]
    tm = x_ref.shape[0] // kp
    cdt = tg_ref.dtype                      # matmul operand dtype (bf16 or f32)

    tg = tg_ref[...]
    fgT = fgT_ref[...]
    w2 = w2_ref[...]

    # 1) x @ w1, merged over all TM atoms.  Exact reassociation of (tg @ x) @ w1.
    a = jnp.dot(x_ref[...], w1_ref[...],
                preferred_element_type=jnp.float32)               # (TM*Kp, H) f32
    a = a.astype(cdt)

    # 2)-4) per-atom to_grid / hidden layer / from_grid.  Static unrolled loop;
    # each per-atom matmul already has M = G rows, which fills the MXU.
    d_parts = []
    for m in range(tm):
        a_m = a[m * kp:(m + 1) * kp, :]                           # (Kp, H)
        # to_grid applied to the H-sized activations: (G,Kp) @ (Kp,H)
        b_m = jnp.dot(tg, a_m, preferred_element_type=jnp.float32)    # (G, H) f32
        b_m = _silu(b_m).astype(cdt)
        # hidden layer: (G,H) @ (H,H)
        c_m = jnp.dot(b_m, w2, preferred_element_type=jnp.float32)    # (G, H) f32
        c_m = _silu(c_m).astype(cdt)
        # from_grid: (Kp,G) @ (G,H).  Exact reassociation of fgT @ (h @ w3).
        d_m = jnp.dot(fgT, c_m, preferred_element_type=jnp.float32)   # (Kp, H) f32
        d_parts.append(d_m.astype(cdt))

    # 5) final linear, merged over all TM atoms: (TM*Kp, H) @ (H, C)
    d = jnp.concatenate(d_parts, axis=0) if tm > 1 else d_parts[0]
    out = jnp.dot(d, w3_ref[...], preferred_element_type=jnp.float32)
    o_ref[...] = out.astype(o_ref.dtype)


def grid_atomwise(x, to_grid_mat, from_grid_mat, w1, w2, w3, *,
                  tm=8, compute_dtype=jnp.bfloat16):
    """x: [N, K, C]; to_grid_mat/from_grid_mat: [res_beta, res_alpha, K]; w*: MLP weights."""
    N, K, C = x.shape
    B, A, K2 = to_grid_mat.shape
    assert K2 == K and from_grid_mat.shape == (B, A, K)
    G = B * A
    H = w1.shape[1]
    assert w1.shape == (C, H) and w2.shape == (H, H) and w3.shape == (H, C)
    assert G % 8 == 0, "res_beta * res_alpha must be a multiple of 8"

    # Pad K up to a sublane multiple so contraction loads/stores are unmasked.
    kp = ((K + 7) // 8) * 8
    # Atom tile: batch atoms to amortize per-step overhead, but keep the grid at
    # least 2 steps when possible (v7x shards "parallel" axes over its 2 TCs).
    tm = max(1, min(tm, pl.cdiv(N, 2)))
    npad = pl.cdiv(N, tm) * tm
    nb = npad // tm

    xp = jnp.pad(x, ((0, npad - N), (0, kp - K), (0, 0))).astype(compute_dtype)
    x_flat = xp.reshape(npad * kp, C)                                   # (Npad*Kp, C)
    tg = jnp.pad(to_grid_mat.reshape(G, K),
                 ((0, 0), (0, kp - K))).astype(compute_dtype)           # (G, Kp)
    fgT = jnp.pad(from_grid_mat.reshape(G, K),
                  ((0, 0), (0, kp - K))).T.astype(compute_dtype)        # (Kp, G)
    w1c = w1.astype(compute_dtype)
    w2c = w2.astype(compute_dtype)
    w3c = w3.astype(compute_dtype)

    isz = np.dtype(compute_dtype).itemsize
    macs = npad * (2 * kp * C * H + 2 * G * kp * H + G * H * H)
    cost = pl.CostEstimate(
        flops=2 * macs,
        transcendentals=2 * npad * G * H,
        bytes_accessed=(npad * kp * C + 2 * G * kp + C * H + H * H + H * C) * isz
        + npad * kp * C * np.dtype(x.dtype).itemsize,
    )

    out = pl.pallas_call(
        grid_atomwise_kernel,
        out_shape=jax.ShapeDtypeStruct((npad * kp, C), x.dtype),
        grid_spec=pltpu.PrefetchScalarGridSpec(
            num_scalar_prefetch=0,
            grid=(nb,),
            in_specs=[
                pl.BlockSpec((tm * kp, C), lambda z: (z, 0)),   # x, TM atoms/step
                pl.BlockSpec((G, kp), lambda z: (0, 0)),        # to_grid   (resident)
                pl.BlockSpec((kp, G), lambda z: (0, 0)),        # from_grid^T (resident)
                pl.BlockSpec((C, H), lambda z: (0, 0)),         # w1
                pl.BlockSpec((H, H), lambda z: (0, 0)),         # w2
                pl.BlockSpec((H, C), lambda z: (0, 0)),         # w3
            ],
            out_specs=pl.BlockSpec((tm * kp, C), lambda z: (z, 0)),
        ),
        compiler_params=pltpu.CompilerParams(
            dimension_semantics=("parallel",)),
        cost_estimate=cost,
    )(x_flat, tg, fgT, w1c, w2c, w3c)

    return out.reshape(npad, kp, C)[:N, :K, :]


def reference(x, to_grid_mat, from_grid_mat, w1, w2, w3):
    # Pure-JAX reference mirroring the PyTorch einsum path (original association).
    g = jnp.einsum("bai,zic->zbac", to_grid_mat, x)
    g = _silu(g @ w1)
    g = _silu(g @ w2)
    g = g @ w3
    return jnp.einsum("bai,zbac->zic", from_grid_mat, g)


if __name__ == "__main__":
    # Small, module-consistent shapes:
    #   lmax = 2 -> K = (lmax+1)^2 = 9 SH coefficients
    #   sphere_channels C = 16, hidden_channels H = 32
    #   SO3 grid: res_beta = 8, res_alpha = 16  (G = 128 grid points), N = 4 atoms
    lmax = 2
    K = (lmax + 1) ** 2
    C, H = 16, 32
    res_beta, res_alpha = 8, 16
    N = 4

    key = jax.random.PRNGKey(0)
    k_x, k_tg, k_fg, k_w1, k_w2, k_w3 = jax.random.split(key, 6)

    x = jax.random.normal(k_x, (N, K, C), dtype=jnp.float32)
    to_grid_mat = jax.random.normal(k_tg, (res_beta, res_alpha, K), jnp.float32) * 0.1
    from_grid_mat = jax.random.normal(k_fg, (res_beta, res_alpha, K), jnp.float32) * 0.1
    w1 = jax.random.normal(k_w1, (C, H), jnp.float32) * (1.0 / jnp.sqrt(C))
    w2 = jax.random.normal(k_w2, (H, H), jnp.float32) * (1.0 / jnp.sqrt(H))
    w3 = jax.random.normal(k_w3, (H, C), jnp.float32) * (1.0 / jnp.sqrt(H))

    ref = reference(x, to_grid_mat, from_grid_mat, w1, w2, w3)

    # Tolerance reflects bf16-level operand precision on the TPU matmul path
    # (the reassociated chain does different matmuls than the reference chain).
    tol = dict(atol=2e-2, rtol=2e-2)

    # f32 operand path.
    out_f32 = jax.block_until_ready(
        grid_atomwise(x, to_grid_mat, from_grid_mat, w1, w2, w3,
                      compute_dtype=jnp.float32))
    assert out_f32.shape == (N, K, C)
    assert jnp.allclose(out_f32, ref, **tol), "f32 mismatch vs reference"

    # bf16 matmul operands (v6e/v7x MXU-native), f32 accumulation + f32 SiLU.
    out_bf16 = jax.block_until_ready(
        grid_atomwise(x, to_grid_mat, from_grid_mat, w1, w2, w3,
                      compute_dtype=jnp.bfloat16))
    assert out_bf16.shape == (N, K, C)
    assert jnp.allclose(out_bf16, ref, **tol), "bf16 mismatch vs reference"

    print("KERNEL_OK")
</pallas_src>

<mosaic_0001>
module attributes {stable_mosaic.version = 11 : i64} {
  func.func @grid_atomwise_kernel(%arg0: i32, %arg1: memref<32x16xf32, #tpu.memory_space<vmem>>, %arg2: memref<128x16xf32, #tpu.memory_space<vmem>>, %arg3: memref<16x128xf32, #tpu.memory_space<vmem>>, %arg4: memref<16x32xf32, #tpu.memory_space<vmem>>, %arg5: memref<32x32xf32, #tpu.memory_space<vmem>>, %arg6: memref<32x16xf32, #tpu.memory_space<vmem>>, %arg7: memref<32x16xf32, #tpu.memory_space<vmem>>) attributes {dimension_semantics = [#tpu.dimension_semantics<parallel>], iteration_bounds = array<i64: 2>, scalar_prefetch = 0 : i64, scratch_operands = 0 : i64, tpu.core_type = #tpu.core_type<tc>, window_params = [{transform_indices = @transform_0, window_bounds = array<i64: 32, 16>}, {pipeline_mode = #tpu.pipeline_mode<synchronous>, transform_indices = @transform_1, window_bounds = array<i64: 128, 16>}, {pipeline_mode = #tpu.pipeline_mode<synchronous>, transform_indices = @transform_2, window_bounds = array<i64: 16, 128>}, {pipeline_mode = #tpu.pipeline_mode<synchronous>, transform_indices = @transform_3, window_bounds = array<i64: 16, 32>}, {pipeline_mode = #tpu.pipeline_mode<synchronous>, transform_indices = @transform_4, window_bounds = array<i64: 32, 32>}, {pipeline_mode = #tpu.pipeline_mode<synchronous>, transform_indices = @transform_5, window_bounds = array<i64: 32, 16>}, {transform_indices = @transform_6, window_bounds = array<i64: 32, 16>}]} {
    %c0 = arith.constant 0 : index
    %c0_0 = arith.constant 0 : index
    %0 = vector.load %arg2[%c0, %c0_0] : memref<128x16xf32, #tpu.memory_space<vmem>>, vector<128x16xf32>
    %c0_1 = arith.constant 0 : index
    %c0_2 = arith.constant 0 : index
    %1 = vector.load %arg3[%c0_1, %c0_2] : memref<16x128xf32, #tpu.memory_space<vmem>>, vector<16x128xf32>
    %c0_3 = arith.constant 0 : index
    %c0_4 = arith.constant 0 : index
    %2 = vector.load %arg5[%c0_3, %c0_4] : memref<32x32xf32, #tpu.memory_space<vmem>>, vector<32x32xf32>
    %c0_5 = arith.constant 0 : index
    %c0_6 = arith.constant 0 : index
    %3 = vector.load %arg1[%c0_5, %c0_6] : memref<32x16xf32, #tpu.memory_space<vmem>>, vector<32x16xf32>
    %c0_7 = arith.constant 0 : index
    %c0_8 = arith.constant 0 : index
    %4 = vector.load %arg4[%c0_7, %c0_8] : memref<16x32xf32, #tpu.memory_space<vmem>>, vector<16x32xf32>
    %cst = arith.constant dense<0.000000e+00> : vector<32x32xf32>
    %5 = tpu.matmul %3, %4, %cst {dimension_numbers = #tpu.dot_dimension_numbers<[1], [0], [0], [1], [0, 0, 1, 1], [], []>} : vector<32x16xf32>, vector<16x32xf32>, vector<32x32xf32> -> vector<32x32xf32>
    %6 = vector.extract_strided_slice %5 {offsets = [0, 0], sizes = [16, 32], strides = [1, 1]} : vector<32x32xf32> to vector<16x32xf32>
    %cst_9 = arith.constant dense<0.000000e+00> : vector<128x32xf32>
    %7 = tpu.matmul %0, %6, %cst_9 {dimension_numbers = #tpu.dot_dimension_numbers<[1], [0], [0], [1], [0, 0, 1, 1], [], []>} : vector<128x16xf32>, vector<16x32xf32>, vector<128x32xf32> -> vector<128x32xf32>
    %8 = arith.negf %7 : vector<128x32xf32>
    %9 = math.exp %8 : vector<128x32xf32>
    %cst_10 = arith.constant 1.000000e+00 : f32
    %10 = vector.broadcast %cst_10 : f32 to vector<128x32xf32>
    %11 = arith.addf %10, %9 : vector<128x32xf32>
    %12 = arith.divf %10, %11 : vector<128x32xf32>
    %13 = arith.mulf %7, %12 : vector<128x32xf32>
    %cst_11 = arith.constant dense<0.000000e+00> : vector<128x32xf32>
    %14 = tpu.matmul %13, %2, %cst_11 {dimension_numbers = #tpu.dot_dimension_numbers<[1], [0], [0], [1], [0, 0, 1, 1], [], []>} : vector<128x32xf32>, vector<32x32xf32>, vector<128x32xf32> -> vector<128x32xf32>
    %15 = arith.negf %14 : vector<128x32xf32>
    %16 = math.exp %15 : vector<128x32xf32>
    %cst_12 = arith.constant 1.000000e+00 : f32
    %17 = vector.broadcast %cst_12 : f32 to vector<128x32xf32>
    %18 = arith.addf %17, %16 : vector<128x32xf32>
    %19 = arith.divf %17, %18 : vector<128x32xf32>
    %20 = arith.mulf %14, %19 : vector<128x32xf32>
    %cst_13 = arith.constant dense<0.000000e+00> : vector<16x32xf32>
    %21 = tpu.matmul %1, %20, %cst_13 {dimension_numbers = #tpu.dot_dimension_numbers<[1], [0], [0], [1], [0, 0, 1, 1], [], []>} : vector<16x128xf32>, vector<128x32xf32>, vector<16x32xf32> -> vector<16x32xf32>
    %22 = vector.extract_strided_slice %5 {offsets = [16, 0], sizes = [16, 32], strides = [1, 1]} : vector<32x32xf32> to vector<16x32xf32>
    %cst_14 = arith.constant dense<0.000000e+00> : vector<128x32xf32>
    %23 = tpu.matmul %0, %22, %cst_14 {dimension_numbers = #tpu.dot_dimension_numbers<[1], [0], [0], [1], [0, 0, 1, 1], [], []>} : vector<128x16xf32>, vector<16x32xf32>, vector<128x32xf32> -> vector<128x32xf32>
    %24 = arith.negf %23 : vector<128x32xf32>
    %25 = math.exp %24 : vector<128x32xf32>
    %cst_15 = arith.constant 1.000000e+00 : f32
    %26 = vector.broadcast %cst_15 : f32 to vector<128x32xf32>
    %27 = arith.addf %26, %25 : vector<128x32xf32>
    %28 = arith.divf %26, %27 : vector<128x32xf32>
    %29 = arith.mulf %23, %28 : vector<128x32xf32>
    %cst_16 = arith.constant dense<0.000000e+00> : vector<128x32xf32>
    %30 = tpu.matmul %29, %2, %cst_16 {dimension_numbers = #tpu.dot_dimension_numbers<[1], [0], [0], [1], [0, 0, 1, 1], [], []>} : vector<128x32xf32>, vector<32x32xf32>, vector<128x32xf32> -> vector<128x32xf32>
    %31 = arith.negf %30 : vector<128x32xf32>
    %32 = math.exp %31 : vector<128x32xf32>
    %cst_17 = arith.constant 1.000000e+00 : f32
    %33 = vector.broadcast %cst_17 : f32 to vector<128x32xf32>
    %34 = arith.addf %33, %32 : vector<128x32xf32>
    %35 = arith.divf %33, %34 : vector<128x32xf32>
    %36 = arith.mulf %30, %35 : vector<128x32xf32>
    %cst_18 = arith.constant dense<0.000000e+00> : vector<16x32xf32>
    %37 = tpu.matmul %1, %36, %cst_18 {dimension_numbers = #tpu.dot_dimension_numbers<[1], [0], [0], [1], [0, 0, 1, 1], [], []>} : vector<16x128xf32>, vector<128x32xf32>, vector<16x32xf32> -> vector<16x32xf32>
    %38 = tpu.concatenate %21, %37 in 0 : vector<16x32xf32>, vector<16x32xf32> -> vector<32x32xf32>
    %c0_19 = arith.constant 0 : index
    %c0_20 = arith.constant 0 : index
    %39 = vector.load %arg6[%c0_19, %c0_20] : memref<32x16xf32, #tpu.memory_space<vmem>>, vector<32x16xf32>
    %cst_21 = arith.constant dense<0.000000e+00> : vector<32x16xf32>
    %40 = tpu.matmul %38, %39, %cst_21 {dimension_numbers = #tpu.dot_dimension_numbers<[1], [0], [0], [1], [0, 0, 1, 1], [], []>} : vector<32x32xf32>, vector<32x16xf32>, vector<32x16xf32> -> vector<32x16xf32>
    %c0_22 = arith.constant 0 : index
    %c0_23 = arith.constant 0 : index
    %41 = vector.load %arg7[%c0_22, %c0_23] : memref<32x16xf32, #tpu.memory_space<vmem>>, vector<32x16xf32>
    tpu.vector_store %arg7[%c0_22, %c0_23], %40 {strides = array<i32>} : memref<32x16xf32, #tpu.memory_space<vmem>>, vector<32x16xf32>,
    return
  }
  func.func @transform_0(%arg0: i32) -> (i32, i32) {
    %c0_i32 = arith.constant 0 : i32
    %c0_i32_0 = arith.constant 0 : i32
    return %arg0, %c0_i32 : i32, i32
  }
  func.func @transform_1(%arg0: i32) -> (i32, i32) {
    %c0_i32 = arith.constant 0 : i32
    %c0_i32_0 = arith.constant 0 : i32
    %c0_i32_1 = arith.constant 0 : i32
    return %c0_i32, %c0_i32_0 : i32, i32
  }
  func.func @transform_2(%arg0: i32) -> (i32, i32) {
    %c0_i32 = arith.constant 0 : i32
    %c0_i32_0 = arith.constant 0 : i32
    %c0_i32_1 = arith.constant 0 : i32
    return %c0_i32, %c0_i32_0 : i32, i32
  }
  func.func @transform_3(%arg0: i32) -> (i32, i32) {
    %c0_i32 = arith.constant 0 : i32
    %c0_i32_0 = arith.constant 0 : i32
    %c0_i32_1 = arith.constant 0 : i32
    return %c0_i32, %c0_i32_0 : i32, i32
  }
  func.func @transform_4(%arg0: i32) -> (i32, i32) {
    %c0_i32 = arith.constant 0 : i32
    %c0_i32_0 = arith.constant 0 : i32
    %c0_i32_1 = arith.constant 0 : i32
    return %c0_i32, %c0_i32_0 : i32, i32
  }
  func.func @transform_5(%arg0: i32) -> (i32, i32) {
    %c0_i32 = arith.constant 0 : i32
    %c0_i32_0 = arith.constant 0 : i32
    %c0_i32_1 = arith.constant 0 : i32
    return %c0_i32, %c0_i32_0 : i32, i32
  }
  func.func @transform_6(%arg0: i32) -> (i32, i32) {
    %c0_i32 = arith.constant 0 : i32
    %c0_i32_0 = arith.constant 0 : i32
    return %arg0, %c0_i32 : i32, i32
  }
}

</mosaic_0001>

<llo_original>
// kernel: tpu_custom_call.1
$region0: #{tpu_custom_call.1}
  #allocation0 [shape = 'u32[]', space=smem, size = 0x4, offset = 0x4, fixed_abs, tag = 'smem constant byte address 0x4 - core index']
  #allocation1 [shape = 'u32[144,128]{1,0:T(1,128)}', space=vmem, size = 0x12000, scoped, tag = 'internal scratch']
  %s0 = inlined_call_operand.vmem [shape: f32[64,16], index: 0, kind: input, shape index: {}]
  %s1 = inlined_call_operand.vmem [shape: f32[128,16], index: 1, kind: input, shape index: {}]
  %s2 = inlined_call_operand.vmem [shape: f32[16,128], index: 2, kind: input, shape index: {}]
  %s3 = inlined_call_operand.vmem [shape: f32[16,32], index: 3, kind: input, shape index: {}]
  %s4 = inlined_call_operand.vmem [shape: f32[32,32], index: 4, kind: input, shape index: {}]
  %s5 = inlined_call_operand.vmem [shape: f32[32,16], index: 5, kind: input, shape index: {}]
  %s6 = inlined_call_operand.vmem [shape: f32[64,16], index: 6, kind: output, shape index: {}]
  %s7 = sld [smem:[#allocation0]]
  $region57: #{tpu_custom_call.1} parent=0
    _
  %s9 = ssub.s32 1, %s7
  %s10 = scalar_select 0, %s9, %s7
  loop: start=0, step=1, limit=4
  $region2: #{tpu_custom_call.1} parent=0 // loop_pre_header
    _
  $region3: #{tpu_custom_call.1} parent=0 // loop_header
    %s12 = sphi 0, %s16
    %p13 = scmp.ge.s32.totalorder %s12, 4
    %s22 = sphi 0, %s24
    %s25 = sphi 0, %s22
    %s26 = sphi 0, %s25
    %s42 = sphi 0, %s26
    %s46 = sphi 0, %s46
    %s48 = sphi 0, %s46
    %s49 = sphi 0, %s48
    %s63 = sphi 0, %s49
    %s67 = sphi 0, %s67
    %s69 = sphi 0, %s67
    %s70 = sphi 0, %s69
    %s84 = sphi 0, %s70
    %s88 = sphi 0, %s88
    %s90 = sphi 0, %s88
    %s91 = sphi 0, %s90
    %s105 = sphi 0, %s91
    %s109 = sphi 0, %s109
    %s111 = sphi 0, %s109
    %s112 = sphi 0, %s111
    %s126 = sphi 0, %s112
    %s130 = sphi 0, %s130
    %s132 = sphi 0, %s130
    %s133 = sphi 0, %s132
    %s147 = sphi 0, %s133
    %s153 = sphi 0, %s155
    %s156 = sphi 0, %s153
    %s157 = sphi 0, %s156
    %s173 = sphi 0, %s157
  $region4: #{tpu_custom_call.1} parent=0 // loop_header_branch
    %15 = sbr.rel (%p13) target = $region8
  $region5: #{tpu_custom_call.1} parent=0 // loop_body
    %s17 = ssub.s32 %s12, 1
    %s18 = ssub.s32 %s12, 2
    %s19 = sadd.s32 %s12, 1
    %s20 = ssub.s32 %s12, %s19
    %p21 = scmp.eq.s32.totalorder %s20, 0
    %s23 = sadd.s32 %s22, 1
    %s24 = scalar_select %p21, %s22, %s23
    %p27 = pneg %p21
    %p28 = scmp.eq.s32.totalorder %s12, 1
    %p29 = por %p27, %p28
    %p30 = scmp.ne.s32.totalorder %s22, %s25
    %p31 = scmp.eq.s32.totalorder %s12, 0
    %p32 = por %p30, %p31
    %p33 = scmp.ne.s32.totalorder %s22, %s25
    %p34 = scmp.eq.s32.totalorder %s17, 1
    %p35 = por %p33, %p34
    %p36 = scmp.ne.s32.totalorder %s25, %s26
    %p37 = scmp.eq.s32.totalorder %s17, 0
    %p38 = por %p36, %p37
    %p39 = scmp.ne.s32.totalorder %s25, %s26
    %p40 = scmp.eq.s32.totalorder %s18, 1
    %p41 = por %p39, %p40
    %p43 = scmp.ne.s32.totalorder %s26, %s42
    %p44 = scmp.eq.s32.totalorder %s18, 0
    %p45 = por %p43, %p44
    %s47 = sadd.s32 %s46, 1
    %p50 = scmp.eq.s32.totalorder %s12, 1
    %p51 = scmp.ne.s32.totalorder %s46, %s48
    %p52 = scmp.eq.s32.totalorder %s12, 0
    %p53 = por %p51, %p52
    %p54 = scmp.ne.s32.totalorder %s46, %s48
    %p55 = scmp.eq.s32.totalorder %s17, 1
    %p56 = por %p54, %p55
    %p57 = scmp.ne.s32.totalorder %s48, %s49
    %p58 = scmp.eq.s32.totalorder %s17, 0
    %p59 = por %p57, %p58
    %p60 = scmp.ne.s32.totalorder %s48, %s49
    %p61 = scmp.eq.s32.totalorder %s18, 1
    %p62 = por %p60, %p61
    %p64 = scmp.ne.s32.totalorder %s49, %s63
    %p65 = scmp.eq.s32.totalorder %s18, 0
    %p66 = por %p64, %p65
    %s68 = sadd.s32 %s67, 1
    %p71 = scmp.eq.s32.totalorder %s12, 1
    %p72 = scmp.ne.s32.totalorder %s67, %s69
    %p73 = scmp.eq.s32.totalorder %s12, 0
    %p74 = por %p72, %p73
    %p75 = scmp.ne.s32.totalorder %s67, %s69
    %p76 = scmp.eq.s32.totalorder %s17, 1
    %p77 = por %p75, %p76
    %p78 = scmp.ne.s32.totalorder %s69, %s70
    %p79 = scmp.eq.s32.totalorder %s17, 0
    %p80 = por %p78, %p79
    %p81 = scmp.ne.s32.totalorder %s69, %s70
    %p82 = scmp.eq.s32.totalorder %s18, 1
    %p83 = por %p81, %p82
    %p85 = scmp.ne.s32.totalorder %s70, %s84
    %p86 = scmp.eq.s32.totalorder %s18, 0
    %p87 = por %p85, %p86
    %s89 = sadd.s32 %s88, 1
    %p92 = scmp.eq.s32.totalorder %s12, 1
    %p93 = scmp.ne.s32.totalorder %s88, %s90
    %p94 = scmp.eq.s32.totalorder %s12, 0
    %p95 = por %p93, %p94
    %p96 = scmp.ne.s32.totalorder %s88, %s90
    %p97 = scmp.eq.s32.totalorder %s17, 1
    %p98 = por %p96, %p97
    %p99 = scmp.ne.s32.totalorder %s90, %s91
    %p100 = scmp.eq.s32.totalorder %s17, 0
    %p101 = por %p99, %p100
    %p102 = scmp.ne.s32.totalorder %s90, %s91
    %p103 = scmp.eq.s32.totalorder %s18, 1
    %p104 = por %p102, %p103
    %p106 = scmp.ne.s32.totalorder %s91, %s105
    %p107 = scmp.eq.s32.totalorder %s18, 0
    %p108 = por %p106, %p107
    %s110 = sadd.s32 %s109, 1
    %p113 = scmp.eq.s32.totalorder %s12, 1
    %p114 = scmp.ne.s32.totalorder %s109, %s111
    %p115 = scmp.eq.s32.totalorder %s12, 0
    %p116 = por %p114, %p115
    %p117 = scmp.ne.s32.totalorder %s109, %s111
    %p118 = scmp.eq.s32.totalorder %s17, 1
    %p119 = por %p117, %p118
    %p120 = scmp.ne.s32.totalorder %s111, %s112
    %p121 = scmp.eq.s32.totalorder %s17, 0
    %p122 = por %p120, %p121
    %p123 = scmp.ne.s32.totalorder %s111, %s112
    %p124 = scmp.eq.s32.totalorder %s18, 1
    %p125 = por %p123, %p124
    %p127 = scmp.ne.s32.totalorder %s112, %s126
    %p128 = scmp.eq.s32.totalorder %s18, 0
    %p129 = por %p127, %p128
    %s131 = sadd.s32 %s130, 1
    %p134 = scmp.eq.s32.totalorder %s12, 1
    %p135 = scmp.ne.s32.totalorder %s130, %s132
    %p136 = scmp.eq.s32.totalorder %s12, 0
    %p137 = por %p135, %p136
    %p138 = scmp.ne.s32.totalorder %s130, %s132
    %p139 = scmp.eq.s32.totalorder %s17, 1
    %p140 = por %p138, %p139
    %p141 = scmp.ne.s32.totalorder %s132, %s133
    %p142 = scmp.eq.s32.totalorder %s17, 0
    %p143 = por %p141, %p142
    %p144 = scmp.ne.s32.totalorder %s132, %s133
    %p145 = scmp.eq.s32.totalorder %s18, 1
    %p146 = por %p144, %p145
    %p148 = scmp.ne.s32.totalorder %s133, %s147
    %p149 = scmp.eq.s32.totalorder %s18, 0
    %p150 = por %p148, %p149
    %s151 = ssub.s32 %s12, %s19
    %p152 = scmp.eq.s32.totalorder %s151, 0
    %s154 = sadd.s32 %s153, 1
    %s155 = scalar_select %p152, %s153, %s154
    %p158 = pneg %p152
    %p159 = scmp.eq.s32.totalorder %s12, 1
    %p160 = por %p158, %p159
    %p161 = scmp.ne.s32.totalorder %s153, %s156
    %p162 = scmp.eq.s32.totalorder %s12, 0
    %p163 = por %p161, %p162
    %p164 = scmp.ne.s32.totalorder %s153, %s156
    %p165 = scmp.eq.s32.totalorder %s17, 1
    %p166 = por %p164, %p165
    %p167 = scmp.ne.s32.totalorder %s156, %s157
    %p168 = scmp.eq.s32.totalorder %s17, 0
    %p169 = por %p167, %p168
    %p170 = scmp.ne.s32.totalorder %s156, %s157
    %p171 = scmp.eq.s32.totalorder %s18, 1
    %p172 = por %p170, %p171
    %p174 = scmp.ne.s32.totalorder %s157, %s173
    %p175 = scmp.eq.s32.totalorder %s18, 0
    %p176 = por %p174, %p175
    %p177 = scmp.le.s32.totalorder 1, %s12
    %p178 = scmp.lt.s32.totalorder %s12, 3
    %p179 = pnand %p177, %p178
    %p180 = pneg %p179
    // Predicated region
    $region9: #{tpu_custom_call.1} parent=5 // pred_check
      _
    $region10: #{tpu_custom_call.1} parent=5 // pred_check_branch
      %182 = sbr.rel (%p179) target = $region12
    $region11: #{tpu_custom_call.1} parent=5 // pred_region
      %s183 = ssub.s32 %s12, 1
      // Predicated region
      $region13: #{tpu_custom_call.1} parent=11 // pred_check
        %p184 = pneg %p59
      $region14: #{tpu_custom_call.1} parent=11 // pred_check_branch
        %186 = sbr.rel (%p184) target = $region16
      $region15: #{tpu_custom_call.1} parent=11 // pred_region
        _
      $region16: #{tpu_custom_call.1} parent=11 // pred_fallthru
        _
      // Predicated region
      $region17: #{tpu_custom_call.1} parent=11 // pred_check
        %p187 = pneg %p80
      $region18: #{tpu_custom_call.1} parent=11 // pred_check_branch
        %189 = sbr.rel (%p187) target = $region20
      $region19: #{tpu_custom_call.1} parent=11 // pred_region
        _
      $region20: #{tpu_custom_call.1} parent=11 // pred_fallthru
        _
      // Predicated region
      $region21: #{tpu_custom_call.1} parent=11 // pred_check
        %p190 = pneg %p101
      $region22: #{tpu_custom_call.1} parent=11 // pred_check_branch
        %192 = sbr.rel (%p190) target = $region24
      $region23: #{tpu_custom_call.1} parent=11 // pred_region
        _
      $region24: #{tpu_custom_call.1} parent=11 // pred_fallthru
        _
      // Predicated region
      $region25: #{tpu_custom_call.1} parent=11 // pred_check
        %p193 = pneg %p122
      $region26: #{tpu_custom_call.1} parent=11 // pred_check_branch
        %195 = sbr.rel (%p193) target = $region28
      $region27: #{tpu_custom_call.1} parent=11 // pred_region
        _
      $region28: #{tpu_custom_call.1} parent=11 // pred_fallthru
        _
      // Predicated region
      $region29: #{tpu_custom_call.1} parent=11 // pred_check
        %p196 = pneg %p143
      $region30: #{tpu_custom_call.1} parent=11 // pred_check_branch
        %198 = sbr.rel (%p196) target = $region32
      $region31: #{tpu_custom_call.1} parent=11 // pred_region
        _
      $region32: #{tpu_custom_call.1} parent=11 // pred_fallthru
        _
    $region12: #{tpu_custom_call.1} parent=5 // pred_fallthru
      _
    %p199 = scmp.lt.s32.totalorder %s12, 2
    // Predicated region
    $region33: #{tpu_custom_call.1} parent=5 // pred_check
      %p200 = pneg %p199
    $region34: #{tpu_custom_call.1} parent=5 // pred_check_branch
      %202 = sbr.rel (%p200) target = $region36
    $region35: #{tpu_custom_call.1} parent=5 // pred_region
      // Predicated region
      $region37: #{tpu_custom_call.1} parent=35 // pred_check
        %p203 = pneg %p32
      $region38: #{tpu_custom_call.1} parent=35 // pred_check_branch
        %205 = sbr.rel (%p203) target = $region40
      $region39: #{tpu_custom_call.1} parent=35 // pred_region
        %s206 = smul.u32 4, %s12
        %p207 = scmp.lt.s32.totalorder %s206, 7
        %s208 = scalar_select %p207, %s206, 7
        %s209 = smul.addr %s208, 8
        %s210 = scalar_lea.vmem %s0, %s209
        %s211 = smul.u32 4, %s12
      $region40: #{tpu_custom_call.1} parent=35 // pred_fallthru
        _
    $region36: #{tpu_custom_call.1} parent=5 // pred_fallthru
      _
    %p212 = scmp.le.s32.totalorder 1, %s12
    %p213 = scmp.lt.s32.totalorder %s12, 3
    %p214 = pnand %p212, %p213
    %p215 = pneg %p214
    // Predicated region
    $region41: #{tpu_custom_call.1} parent=5 // pred_check
      _
    $region42: #{tpu_custom_call.1} parent=5 // pred_check_branch
      %217 = sbr.rel (%p214) target = $region44
    $region43: #{tpu_custom_call.1} parent=5 // pred_region
      %s218 = ssub.s32 %s12, 1
      %s219 = smul.u32 4, %s17
      %p220 = scmp.lt.s32.totalorder %s219, 7
      %s221 = scalar_select %p220, %s219, 7
      %s222 = smul.addr %s221, 8
      %s223 = scalar_lea.vmem %s0, %s222
      %p224 = pneg %p38
      %p225 = pneg %p35
      %p226 = pneg %p59
      %p227 = pneg %p56
      %p228 = pneg %p80
      %p229 = pneg %p77
      %p230 = pneg %p101
      %p231 = pneg %p98
      %p232 = pneg %p122
      %p233 = pneg %p119
      %p234 = pneg %p143
      %p235 = pneg %p140
      %p236 = pneg %p169
      %p237 = pneg %p166
      %s238 = smul.u32 4, %s17
      %p239 = scmp.lt.s32.totalorder %s238, 7
      %s240 = scalar_select %p239, %s238, 7
      %s241 = smul.addr %s240, 8
      %s242 = scalar_lea.vmem %s6, %s241
      %s243 = smul.u32 4, %s17
      %p244 = scmp.lt.s32.totalorder %s243, 7
      %s245 = scalar_select %p244, %s243, 7
      %s246 = smul.addr %s245, 8
      %s247 = scalar_lea.vmem %s0, %s246
      %s248 = smul.u32 4, %s17
      %s249 = smul.u32 4, %s17
      %p250 = scmp.lt.s32.totalorder %s249, 7
      %s251 = scalar_select %p250, %s249, 7
      %s252 = smul.addr %s251, 8
      %s253 = scalar_lea.vmem %s6, %s252
      %s254 = smul.u32 4, %s17
      %v255 = vld [vmem:[%s1] sm:$0xff]
      %v256 = vld [vmem:[%s1 + $0x8] sm:$0xff]
      %v257 = vld [vmem:[%s1 + $0x10] sm:$0xff]
      %v258 = vld [vmem:[%s1 + $0x18] sm:$0xff]
      %v259 = vld [vmem:[%s1 + $0x20] sm:$0xff]
      %v260 = vld [vmem:[%s1 + $0x28] sm:$0xff]
      %v261 = vld [vmem:[%s1 + $0x30] sm:$0xff]
      %v262 = vld [vmem:[%s1 + $0x38] sm:$0xff]
      %v263 = vld [vmem:[%s1 + $0x40] sm:$0xff]
      %v264 = vld [vmem:[%s1 + $0x48] sm:$0xff]
      %v265 = vld [vmem:[%s1 + $0x50] sm:$0xff]
      %v266 = vld [vmem:[%s1 + $0x58] sm:$0xff]
      %v267 = vld [vmem:[%s1 + $0x60] sm:$0xff]
      %v268 = vld [vmem:[%s1 + $0x68] sm:$0xff]
      %v269 = vld [vmem:[%s1 + $0x70] sm:$0xff]
      %v270 = vld [vmem:[%s1 + $0x78] sm:$0xff]
      %v271 = vld [vmem:[%s2] sm:$0xff]
      %v272 = vld [vmem:[%s2 + $0x8] sm:$0xff]
      %v273 = vld [vmem:[%s4] sm:$0xff]
      %v274 = vld [vmem:[%s4 + $0x8] sm:$0xff]
      %v275 = vld [vmem:[%s4 + $0x10] sm:$0xff]
      %v276 = vld [vmem:[%s4 + $0x18] sm:$0xff]
      %v277 = vld [vmem:[%s247] sm:$0xff]
      %v278 = vld [vmem:[%s247 + $0x8] sm:$0xff]
      %v279 = vld [vmem:[%s247 + $0x10] sm:$0xff]
      %v280 = vld [vmem:[%s247 + $0x18] sm:$0xff]
      %v281 = vld [vmem:[%s3] sm:$0xff]
      %v282 = vld [vmem:[%s3 + $0x8] sm:$0xff]
      %vm283 = vcmask 130048
      %v285 = vsel %vm283, %v277, 0
      %v288 = vsel %vm283, %v278, 0
      %v291 = vsel %vm283, %v279, 0
      %v294 = vsel %vm283, %v280, 0
      %296 = vmatprep.subr.mxu0 0.0
      %297 = vmatpush1.msra.mxu0 0.0
      %298 = vmatprep.subr.mxu0 0.0
      %299 = vmatpush1.msra.mxu0 0.0
      %300 = vmatprep.subr.mxu0 0.0
      %301 = vmatpush1.msra.mxu0 0.0
      %302 = vmatprep.subr.mxu0 0.0
      %303 = vmatpush1.msra.mxu0 0.0
      %304 = vmatprep.subr.mxu0 0.0
      %305 = vmatpush1.msra.mxu0 0.0
      %306 = vmatprep.subr.mxu0 0.0
      %307 = vmatpush1.msra.mxu0 0.0
      %308 = vmatprep.subr.mxu0 0.0
      %309 = vmatpush1.msra.mxu0 0.0
      %310 = vmatprep.subr.mxu0 0.0
      %311 = vmatpush1.msra.mxu0 0.0
      %312 = vmatprep.subr.mxu0 0.0
      %313 = vmatpush1.msra.mxu0 0.0
      %314 = vmatprep.subr.mxu0 0.0
      %315 = vmatpush1.msra.mxu0 0.0
      %316 = vmatprep.subr.mxu0 0.0
      %317 = vmatpush1.msra.mxu0 0.0
      %318 = vmatprep.subr.mxu0 0.0
      %319 = vmatpush1.msra.mxu0 0.0
      %320 = vmatprep.subr.mxu0 0.0
      %321 = vmatpush1.msra.mxu0 0.0
      %322 = vmatprep.subr.mxu0 0.0
      %323 = vmatpush1.msra.mxu0 0.0
      %324 = vmatprep.subr.mxu0 0.0
      %325 = vmatpush1.msra.mxu0 %v282
      %326 = vmatprep.subr.mxu0 0.0
      %327 = vmatpush1.msra.mxu0 %v281
      %328 = vmatprep.subr.mxu0 0.0
      %329 = vmatpush2.msra.mxu0 0.0
      %330 = vmatprep.subr.mxu0 0.0
      %331 = vmatpush2.msra.mxu0 0.0
      %332 = vmatprep.subr.mxu0 0.0
      %333 = vmatpush2.msra.mxu0 0.0
      %334 = vmatprep.subr.mxu0 0.0
      %335 = vmatpush2.msra.mxu0 0.0
      %336 = vmatprep.subr.mxu0 0.0
      %337 = vmatpush2.msra.mxu0 0.0
      %338 = vmatprep.subr.mxu0 0.0
      %339 = vmatpush2.msra.mxu0 0.0
      %340 = vmatprep.subr.mxu0 0.0
      %341 = vmatpush2.msra.mxu0 0.0
      %342 = vmatprep.subr.mxu0 0.0
      %343 = vmatpush2.msra.mxu0 0.0
      %344 = vmatprep.subr.mxu0 0.0
      %345 = vmatpush2.msra.mxu0 0.0
      %346 = vmatprep.subr.mxu0 0.0
      %347 = vmatpush2.msra.mxu0 0.0
      %348 = vmatprep.subr.mxu0 0.0
      %349 = vmatpush2.msra.mxu0 0.0
      %350 = vmatprep.subr.mxu0 0.0
      %351 = vmatpush2.msra.mxu0 0.0
      %352 = vmatprep.subr.mxu0 0.0
      %353 = vmatpush2.msra.mxu0 0.0
      %354 = vmatprep.subr.mxu0 0.0
      %355 = vmatpush2.msra.mxu0 0.0
      %356 = vmatprep.subr.mxu0 0.0
      %357 = vmatpush2.msra.mxu0 0.0
      %358 = vmatprep.subr.mxu0 0.0
      %359 = vmatpush2.msra.mxu0 0.0
      %360 = vmatprep.mubr.f32.mxu0 0.0
      %361 = vmatmul.mubr.f32.gmra.mxu0 %v285
      %v362 = vpop.f32.mrf.mxu0
      %v363 = vadd.f32 0.0, %v362
      %v364 = vpop.f32.mrf.mxu0
      %365 = vmatprep.mubr.f32.mxu0 0.0
      %366 = vmatmul.mubr.f32.gmra.mxu0 %v288
      %v367 = vpop.f32.mrf.mxu0
      %v368 = vadd.f32 0.0, %v367
      %v369 = vpop.f32.mrf.mxu0
      %370 = vmatprep.mubr.f32.mxu0 0.0
      %371 = vmatmul.mubr.f32.gmra.mxu0 %v291
      %v372 = vpop.f32.mrf.mxu0
      %v373 = vadd.f32 0.0, %v372
      %v374 = vpop.f32.mrf.mxu0
      %375 = vmatprep.mubr.f32.mxu0 0.0
      %376 = vmatmul.mubr.f32.gmra.mxu0 %v294
      %v377 = vpop.f32.mrf.mxu0
      %v378 = vadd.f32 0.0, %v377
      %v379 = vpop.f32.mrf.mxu0
      %380 = vdwg.mxu0
      %v382 = vsel %vm283, %v255, 0
      %v385 = vsel %vm283, %v256, 0
      %v388 = vsel %vm283, %v257, 0
      %v391 = vsel %vm283, %v258, 0
      %v394 = vsel %vm283, %v259, 0
      %v397 = vsel %vm283, %v260, 0
      %v400 = vsel %vm283, %v261, 0
      %v403 = vsel %vm283, %v262, 0
      %v406 = vsel %vm283, %v263, 0
      %v409 = vsel %vm283, %v264, 0
      %v412 = vsel %vm283, %v265, 0
      %v415 = vsel %vm283, %v266, 0
      %v418 = vsel %vm283, %v267, 0
      %v421 = vsel %vm283, %v268, 0
      %v424 = vsel %vm283, %v269, 0
      %v427 = vsel %vm283, %v270, 0
      %429 = vmatprep.subr.mxu0 0.0
      %430 = vmatpush1.msra.mxu0 0.0
      %431 = vmatprep.subr.mxu0 0.0
      %432 = vmatpush1.msra.mxu0 0.0
      %433 = vmatprep.subr.mxu0 0.0
      %434 = vmatpush1.msra.mxu0 0.0
      %435 = vmatprep.subr.mxu0 0.0
      %436 = vmatpush1.msra.mxu0 0.0
      %437 = vmatprep.subr.mxu0 0.0
      %438 = vmatpush1.msra.mxu0 0.0
      %439 = vmatprep.subr.mxu0 0.0
      %440 = vmatpush1.msra.mxu0 0.0
      %441 = vmatprep.subr.mxu0 0.0
      %442 = vmatpush1.msra.mxu0 0.0
      %443 = vmatprep.subr.mxu0 0.0
      %444 = vmatpush1.msra.mxu0 0.0
      %445 = vmatprep.subr.mxu0 0.0
      %446 = vmatpush1.msra.mxu0 0.0
      %447 = vmatprep.subr.mxu0 0.0
      %448 = vmatpush1.msra.mxu0 0.0
      %449 = vmatprep.subr.mxu0 0.0
      %450 = vmatpush1.msra.mxu0 0.0
      %451 = vmatprep.subr.mxu0 0.0
      %452 = vmatpush1.msra.mxu0 0.0
      %453 = vmatprep.subr.mxu0 0.0
      %454 = vmatpush1.msra.mxu0 0.0
      %455 = vmatprep.subr.mxu0 0.0
      %456 = vmatpush1.msra.mxu0 0.0
      %457 = vmatprep.subr.mxu0 0.0
      %458 = vmatpush1.msra.mxu0 %v368
      %459 = vmatprep.subr.mxu0 0.0
      %460 = vmatpush1.msra.mxu0 %v363
      %461 = vmatprep.subr.mxu0 0.0
      %462 = vmatpush2.msra.mxu0 0.0
      %463 = vmatprep.subr.mxu0 0.0
      %464 = vmatpush2.msra.mxu0 0.0
      %465 = vmatprep.subr.mxu0 0.0
      %466 = vmatpush2.msra.mxu0 0.0
      %467 = vmatprep.subr.mxu0 0.0
      %468 = vmatpush2.msra.mxu0 0.0
      %469 = vmatprep.subr.mxu0 0.0
      %470 = vmatpush2.msra.mxu0 0.0
      %471 = vmatprep.subr.mxu0 0.0
      %472 = vmatpush2.msra.mxu0 0.0
      %473 = vmatprep.subr.mxu0 0.0
      %474 = vmatpush2.msra.mxu0 0.0
      %475 = vmatprep.subr.mxu0 0.0
      %476 = vmatpush2.msra.mxu0 0.0
      %477 = vmatprep.subr.mxu0 0.0
      %478 = vmatpush2.msra.mxu0 0.0
      %479 = vmatprep.subr.mxu0 0.0
      %480 = vmatpush2.msra.mxu0 0.0
      %481 = vmatprep.subr.mxu0 0.0
      %482 = vmatpush2.msra.mxu0 0.0
      %483 = vmatprep.subr.mxu0 0.0
      %484 = vmatpush2.msra.mxu0 0.0
      %485 = vmatprep.subr.mxu0 0.0
      %486 = vmatpush2.msra.mxu0 0.0
      %487 = vmatprep.subr.mxu0 0.0
      %488 = vmatpush2.msra.mxu0 0.0
      %489 = vmatprep.subr.mxu0 0.0
      %490 = vmatpush2.msra.mxu0 0.0
      %491 = vmatprep.subr.mxu0 0.0
      %492 = vmatpush2.msra.mxu0 0.0
      %493 = vmatprep.mubr.f32.mxu0 0.0
      %494 = vmatmul.mubr.f32.gmra.mxu0 %v382
      %v495 = vpop.f32.mrf.mxu0
      %v496 = vadd.f32 0.0, %v495
      %v497 = vpop.f32.mrf.mxu0
      %498 = vmatprep.mubr.f32.mxu0 0.0
      %499 = vmatmul.mubr.f32.gmra.mxu0 %v385
      %v500 = vpop.f32.mrf.mxu0
      %v501 = vadd.f32 0.0, %v500
      %v502 = vpop.f32.mrf.mxu0
      %503 = vmatprep.mubr.f32.mxu0 0.0
      %504 = vmatmul.mubr.f32.gmra.mxu0 %v388
      %v505 = vpop.f32.mrf.mxu0
      %v506 = vadd.f32 0.0, %v505
      %v507 = vpop.f32.mrf.mxu0
      %508 = vmatprep.mubr.f32.mxu0 0.0
      %509 = vmatmul.mubr.f32.gmra.mxu0 %v391
      %v510 = vpop.f32.mrf.mxu0
      %v511 = vadd.f32 0.0, %v510
      %v512 = vpop.f32.mrf.mxu0
      %513 = vmatprep.mubr.f32.mxu0 0.0
      %514 = vmatmul.mubr.f32.gmra.mxu0 %v394
      %v515 = vpop.f32.mrf.mxu0
      %v516 = vadd.f32 0.0, %v515
      %v517 = vpop.f32.mrf.mxu0
      %518 = vmatprep.mubr.f32.mxu0 0.0
      %519 = vmatmul.mubr.f32.gmra.mxu0 %v397
      %v520 = vpop.f32.mrf.mxu0
      %v521 = vadd.f32 0.0, %v520
      %v522 = vpop.f32.mrf.mxu0
      %523 = vmatprep.mubr.f32.mxu0 0.0
      %524 = vmatmul.mubr.f32.gmra.mxu0 %v400
      %v525 = vpop.f32.mrf.mxu0
      %v526 = vadd.f32 0.0, %v525
      %v527 = vpop.f32.mrf.mxu0
      %528 = vmatprep.mubr.f32.mxu0 0.0
      %529 = vmatmul.mubr.f32.gmra.mxu0 %v403
      %v530 = vpop.f32.mrf.mxu0
      %v531 = vadd.f32 0.0, %v530
      %v532 = vpop.f32.mrf.mxu0
      %533 = vmatprep.mubr.f32.mxu0 0.0
      %534 = vmatmul.mubr.f32.gmra.mxu0 %v406
      %v535 = vpop.f32.mrf.mxu0
      %v536 = vadd.f32 0.0, %v535
      %v537 = vpop.f32.mrf.mxu0
      %538 = vmatprep.mubr.f32.mxu0 0.0
      %539 = vmatmul.mubr.f32.gmra.mxu0 %v409
      %v540 = vpop.f32.mrf.mxu0
      %v541 = vadd.f32 0.0, %v540
      %v542 = vpop.f32.mrf.mxu0
      %543 = vmatprep.mubr.f32.mxu0 0.0
      %544 = vmatmul.mubr.f32.gmra.mxu0 %v412
      %v545 = vpop.f32.mrf.mxu0
      %v546 = vadd.f32 0.0, %v545
      %v547 = vpop.f32.mrf.mxu0
      %548 = vmatprep.mubr.f32.mxu0 0.0
      %549 = vmatmul.mubr.f32.gmra.mxu0 %v415
      %v550 = vpop.f32.mrf.mxu0
      %v551 = vadd.f32 0.0, %v550
      %v552 = vpop.f32.mrf.mxu0
      %553 = vmatprep.mubr.f32.mxu0 0.0
      %554 = vmatmul.mubr.f32.gmra.mxu0 %v418
      %v555 = vpop.f32.mrf.mxu0
      %v556 = vadd.f32 0.0, %v555
      %v557 = vpop.f32.mrf.mxu0
      %558 = vmatprep.mubr.f32.mxu0 0.0
      %559 = vmatmul.mubr.f32.gmra.mxu0 %v421
      %v560 = vpop.f32.mrf.mxu0
      %v561 = vadd.f32 0.0, %v560
      %v562 = vpop.f32.mrf.mxu0
      %563 = vmatprep.mubr.f32.mxu0 0.0
      %564 = vmatmul.mubr.f32.gmra.mxu0 %v424
      %v565 = vpop.f32.mrf.mxu0
      %v566 = vadd.f32 0.0, %v565
      %v567 = vpop.f32.mrf.mxu0
      %568 = vmatprep.mubr.f32.mxu0 0.0
      %569 = vmatmul.mubr.f32.gmra.mxu0 %v427
      %v570 = vpop.f32.mrf.mxu0
      %v571 = vadd.f32 0.0, %v570
      %v572 = vpop.f32.mrf.mxu0
      %573 = vdwg.mxu0
      %v574 = vxor.u32 %v496, 2147483648
      %v575 = vxor.u32 %v501, 2147483648
      %v576 = vxor.u32 %v506, 2147483648
      %v577 = vxor.u32 %v511, 2147483648
      %v578 = vxor.u32 %v516, 2147483648
      %v579 = vxor.u32 %v521, 2147483648
      %v580 = vxor.u32 %v526, 2147483648
      %v581 = vxor.u32 %v531, 2147483648
      %v582 = vxor.u32 %v536, 2147483648
      %v583 = vxor.u32 %v541, 2147483648
      %v584 = vxor.u32 %v546, 2147483648
      %v585 = vxor.u32 %v551, 2147483648
      %v586 = vxor.u32 %v556, 2147483648
      %v587 = vxor.u32 %v561, 2147483648
      %v588 = vxor.u32 %v566, 2147483648
      %v589 = vxor.u32 %v571, 2147483648
      %v590 = vmul.f32 %v574, 1.442695
      %v591 = vpow.pop %v590
      %v592 = vmul.f32 %v575, 1.442695
      %v593 = vpow.pop %v592
      %v594 = vmul.f32 %v576, 1.442695
      %v595 = vpow.pop %v594
      %v596 = vmul.f32 %v577, 1.442695
      %v597 = vpow.pop %v596
      %v598 = vmul.f32 %v578, 1.442695
      %v599 = vpow.pop %v598
      %v600 = vmul.f32 %v579, 1.442695
      %v601 = vpow.pop %v600
      %v602 = vmul.f32 %v580, 1.442695
      %v603 = vpow.pop %v602
      %v604 = vmul.f32 %v581, 1.442695
      %v605 = vpow.pop %v604
      %v606 = vmul.f32 %v582, 1.442695
      %v607 = vpow.pop %v606
      %v608 = vmul.f32 %v583, 1.442695
      %v609 = vpow.pop %v608
      %v610 = vmul.f32 %v584, 1.442695
      %v611 = vpow.pop %v610
      %v612 = vmul.f32 %v585, 1.442695
      %v613 = vpow.pop %v612
      %v614 = vmul.f32 %v586, 1.442695
      %v615 = vpow.pop %v614
      %v616 = vmul.f32 %v587, 1.442695
      %v617 = vpow.pop %v616
      %v618 = vmul.f32 %v588, 1.442695
      %v619 = vpow.pop %v618
      %v620 = vmul.f32 %v589, 1.442695
      %v621 = vpow.pop %v620
      %v622 = vadd.f32 %v591, 1.0
      %v623 = vadd.f32 %v593, 1.0
      %v624 = vadd.f32 %v595, 1.0
      %v625 = vadd.f32 %v597, 1.0
      %v626 = vadd.f32 %v599, 1.0
      %v627 = vadd.f32 %v601, 1.0
      %v628 = vadd.f32 %v603, 1.0
      %v629 = vadd.f32 %v605, 1.0
      %v630 = vadd.f32 %v607, 1.0
      %v631 = vadd.f32 %v609, 1.0
      %v632 = vadd.f32 %v611, 1.0
      %v633 = vadd.f32 %v613, 1.0
      %v634 = vadd.f32 %v615, 1.0
      %v635 = vadd.f32 %v617, 1.0
      %v636 = vadd.f32 %v619, 1.0
      %v637 = vadd.f32 %v621, 1.0
      %v638 = vrcp.pop %v622
      %v639 = vmul.f32 1.0, %v638
      %v640 = vrcp.pop %v623
      %v641 = vmul.f32 1.0, %v640
      %v642 = vrcp.pop %v624
      %v643 = vmul.f32 1.0, %v642
      %v644 = vrcp.pop %v625
      %v645 = vmul.f32 1.0, %v644
      %v646 = vrcp.pop %v626
      %v647 = vmul.f32 1.0, %v646
      %v648 = vrcp.pop %v627
      %v649 = vmul.f32 1.0, %v648
      %v650 = vrcp.pop %v628
      %v651 = vmul.f32 1.0, %v650
      %v652 = vrcp.pop %v629
      %v653 = vmul.f32 1.0, %v652
      %v654 = vrcp.pop %v630
      %v655 = vmul.f32 1.0, %v654
      %v656 = vrcp.pop %v631
      %v657 = vmul.f32 1.0, %v656
      %v658 = vrcp.pop %v632
      %v659 = vmul.f32 1.0, %v658
      %v660 = vrcp.pop %v633
      %v661 = vmul.f32 1.0, %v660
      %v662 = vrcp.pop %v634
      %v663 = vmul.f32 1.0, %v662
      %v664 = vrcp.pop %v635
      %v665 = vmul.f32 1.0, %v664
      %v666 = vrcp.pop %v636
      %v667 = vmul.f32 1.0, %v666
      %v668 = vrcp.pop %v637
      %v669 = vmul.f32 1.0, %v668
      %v670 = vmul.f32 %v496, %v639
      %v671 = vmul.f32 %v501, %v641
      %v672 = vmul.f32 %v506, %v643
      %v673 = vmul.f32 %v511, %v645
      %v674 = vmul.f32 %v516, %v647
      %v675 = vmul.f32 %v521, %v649
      %v676 = vmul.f32 %v526, %v651
      %v677 = vmul.f32 %v531, %v653
      %v678 = vmul.f32 %v536, %v655
      %v679 = vmul.f32 %v541, %v657
      %v680 = vmul.f32 %v546, %v659
      %v681 = vmul.f32 %v551, %v661
      %v682 = vmul.f32 %v556, %v663
      %v683 = vmul.f32 %v561, %v665
      %v684 = vmul.f32 %v566, %v667
      %v685 = vmul.f32 %v571, %v669
      %vm686 = vcmask 261120
      %v688 = vsel %vm686, %v670, 0
      %v691 = vsel %vm686, %v671, 0
      %v694 = vsel %vm686, %v672, 0
      %v697 = vsel %vm686, %v673, 0
      %v700 = vsel %vm686, %v674, 0
      %v703 = vsel %vm686, %v675, 0
      %v706 = vsel %vm686, %v676, 0
      %v709 = vsel %vm686, %v677, 0
      %v712 = vsel %vm686, %v678, 0
      %v715 = vsel %vm686, %v679, 0
      %v718 = vsel %vm686, %v680, 0
      %v721 = vsel %vm686, %v681, 0
      %v724 = vsel %vm686, %v682, 0
      %v727 = vsel %vm686, %v683, 0
      %v730 = vsel %vm686, %v684, 0
      %v733 = vsel %vm686, %v685, 0
      %735 = vmatprep.subr.mxu0 0.0
      %736 = vmatpush1.msra.mxu0 0.0
      %737 = vmatprep.subr.mxu0 0.0
      %738 = vmatpush1.msra.mxu0 0.0
      %739 = vmatprep.subr.mxu0 0.0
      %740 = vmatpush1.msra.mxu0 0.0
      %741 = vmatprep.subr.mxu0 0.0
      %742 = vmatpush1.msra.mxu0 0.0
      %743 = vmatprep.subr.mxu0 0.0
      %744 = vmatpush1.msra.mxu0 0.0
      %745 = vmatprep.subr.mxu0 0.0
      %746 = vmatpush1.msra.mxu0 0.0
      %747 = vmatprep.subr.mxu0 0.0
      %748 = vmatpush1.msra.mxu0 0.0
      %749 = vmatprep.subr.mxu0 0.0
      %750 = vmatpush1.msra.mxu0 0.0
      %751 = vmatprep.subr.mxu0 0.0
      %752 = vmatpush1.msra.mxu0 0.0
      %753 = vmatprep.subr.mxu0 0.0
      %754 = vmatpush1.msra.mxu0 0.0
      %755 = vmatprep.subr.mxu0 0.0
      %756 = vmatpush1.msra.mxu0 0.0
      %757 = vmatprep.subr.mxu0 0.0
      %758 = vmatpush1.msra.mxu0 0.0
      %759 = vmatprep.subr.mxu0 0.0
      %760 = vmatpush1.msra.mxu0 %v276
      %761 = vmatprep.subr.mxu0 0.0
      %762 = vmatpush1.msra.mxu0 %v275
      %763 = vmatprep.subr.mxu0 0.0
      %764 = vmatpush1.msra.mxu0 %v274
      %765 = vmatprep.subr.mxu0 0.0
      %766 = vmatpush1.msra.mxu0 %v273
      %767 = vmatprep.subr.mxu0 0.0
      %768 = vmatpush2.msra.mxu0 0.0
      %769 = vmatprep.subr.mxu0 0.0
      %770 = vmatpush2.msra.mxu0 0.0
      %771 = vmatprep.subr.mxu0 0.0
      %772 = vmatpush2.msra.mxu0 0.0
      %773 = vmatprep.subr.mxu0 0.0
      %774 = vmatpush2.msra.mxu0 0.0
      %775 = vmatprep.subr.mxu0 0.0
      %776 = vmatpush2.msra.mxu0 0.0
      %777 = vmatprep.subr.mxu0 0.0
      %778 = vmatpush2.msra.mxu0 0.0
      %779 = vmatprep.subr.mxu0 0.0
      %780 = vmatpush2.msra.mxu0 0.0
      %781 = vmatprep.subr.mxu0 0.0
      %782 = vmatpush2.msra.mxu0 0.0
      %783 = vmatprep.subr.mxu0 0.0
      %784 = vmatpush2.msra.mxu0 0.0
      %785 = vmatprep.subr.mxu0 0.0
      %786 = vmatpush2.msra.mxu0 0.0
      %787 = vmatprep.subr.mxu0 0.0
      %788 = vmatpush2.msra.mxu0 0.0
      %789 = vmatprep.subr.mxu0 0.0
      %790 = vmatpush2.msra.mxu0 0.0
      %791 = vmatprep.subr.mxu0 0.0
      %792 = vmatpush2.msra.mxu0 0.0
      %793 = vmatprep.subr.mxu0 0.0
      %794 = vmatpush2.msra.mxu0 0.0
      %795 = vmatprep.subr.mxu0 0.0
      %796 = vmatpush2.msra.mxu0 0.0
      %797 = vmatprep.subr.mxu0 0.0
      %798 = vmatpush2.msra.mxu0 0.0
      %799 = vmatprep.mubr.f32.mxu0 0.0
      %800 = vmatmul.mubr.f32.gmra.mxu0 %v688
      %v801 = vpop.f32.mrf.mxu0
      %v802 = vadd.f32 0.0, %v801
      %v803 = vpop.f32.mrf.mxu0
      %804 = vmatprep.mubr.f32.mxu0 0.0
      %805 = vmatmul.mubr.f32.gmra.mxu0 %v691
      %v806 = vpop.f32.mrf.mxu0
      %v807 = vadd.f32 0.0, %v806
      %v808 = vpop.f32.mrf.mxu0
      %809 = vmatprep.mubr.f32.mxu0 0.0
      %810 = vmatmul.mubr.f32.gmra.mxu0 %v694
      %v811 = vpop.f32.mrf.mxu0
      %v812 = vadd.f32 0.0, %v811
      %v813 = vpop.f32.mrf.mxu0
      %814 = vmatprep.mubr.f32.mxu0 0.0
      %815 = vmatmul.mubr.f32.gmra.mxu0 %v697
      %v816 = vpop.f32.mrf.mxu0
      %v817 = vadd.f32 0.0, %v816
      %v818 = vpop.f32.mrf.mxu0
      %819 = vmatprep.mubr.f32.mxu0 0.0
      %820 = vmatmul.mubr.f32.gmra.mxu0 %v700
      %v821 = vpop.f32.mrf.mxu0
      %v822 = vadd.f32 0.0, %v821
      %v823 = vpop.f32.mrf.mxu0
      %824 = vmatprep.mubr.f32.mxu0 0.0
      %825 = vmatmul.mubr.f32.gmra.mxu0 %v703
      %v826 = vpop.f32.mrf.mxu0
      %v827 = vadd.f32 0.0, %v826
      %v828 = vpop.f32.mrf.mxu0
      %829 = vmatprep.mubr.f32.mxu0 0.0
      %830 = vmatmul.mubr.f32.gmra.mxu0 %v706
      %v831 = vpop.f32.mrf.mxu0
      %v832 = vadd.f32 0.0, %v831
      %v833 = vpop.f32.mrf.mxu0
      %834 = vmatprep.mubr.f32.mxu0 0.0
      %835 = vmatmul.mubr.f32.gmra.mxu0 %v709
      %v836 = vpop.f32.mrf.mxu0
      %v837 = vadd.f32 0.0, %v836
      %v838 = vpop.f32.mrf.mxu0
      %839 = vmatprep.mubr.f32.mxu0 0.0
      %840 = vmatmul.mubr.f32.gmra.mxu0 %v712
      %v841 = vpop.f32.mrf.mxu0
      %v842 = vadd.f32 0.0, %v841
      %v843 = vpop.f32.mrf.mxu0
      %844 = vmatprep.mubr.f32.mxu0 0.0
      %845 = vmatmul.mubr.f32.gmra.mxu0 %v715
      %v846 = vpop.f32.mrf.mxu0
      %v847 = vadd.f32 0.0, %v846
      %v848 = vpop.f32.mrf.mxu0
      %849 = vmatprep.mubr.f32.mxu0 0.0
      %850 = vmatmul.mubr.f32.gmra.mxu0 %v718
      %v851 = vpop.f32.mrf.mxu0
      %v852 = vadd.f32 0.0, %v851
      %v853 = vpop.f32.mrf.mxu0
      %854 = vmatprep.mubr.f32.mxu0 0.0
      %855 = vmatmul.mubr.f32.gmra.mxu0 %v721
      %v856 = vpop.f32.mrf.mxu0
      %v857 = vadd.f32 0.0, %v856
      %v858 = vpop.f32.mrf.mxu0
      %859 = vmatprep.mubr.f32.mxu0 0.0
      %860 = vmatmul.mubr.f32.gmra.mxu0 %v724
      %v861 = vpop.f32.mrf.mxu0
      %v862 = vadd.f32 0.0, %v861
      %v863 = vpop.f32.mrf.mxu0
      %864 = vmatprep.mubr.f32.mxu0 0.0
      %865 = vmatmul.mubr.f32.gmra.mxu0 %v727
      %v866 = vpop.f32.mrf.mxu0
      %v867 = vadd.f32 0.0, %v866
      %v868 = vpop.f32.mrf.mxu0
      %869 = vmatprep.mubr.f32.mxu0 0.0
      %870 = vmatmul.mubr.f32.gmra.mxu0 %v730
      %v871 = vpop.f32.mrf.mxu0
      %v872 = vadd.f32 0.0, %v871
      %v873 = vpop.f32.mrf.mxu0
      %874 = vmatprep.mubr.f32.mxu0 0.0
      %875 = vmatmul.mubr.f32.gmra.mxu0 %v733
      %v876 = vpop.f32.mrf.mxu0
      %v877 = vadd.f32 0.0, %v876
      %v878 = vpop.f32.mrf.mxu0
      %879 = vdwg.mxu0
      %v880 = vxor.u32 %v802, 2147483648
      %v881 = vxor.u32 %v807, 2147483648
      %v882 = vxor.u32 %v812, 2147483648
      %v883 = vxor.u32 %v817, 2147483648
      %v884 = vxor.u32 %v822, 2147483648
      %v885 = vxor.u32 %v827, 2147483648
      %v886 = vxor.u32 %v832, 2147483648
      %v887 = vxor.u32 %v837, 2147483648
      %v888 = vxor.u32 %v842, 2147483648
      %v889 = vxor.u32 %v847, 2147483648
      %v890 = vxor.u32 %v852, 2147483648
      %v891 = vxor.u32 %v857, 2147483648
      %v892 = vxor.u32 %v862, 2147483648
      %v893 = vxor.u32 %v867, 2147483648
      %v894 = vxor.u32 %v872, 2147483648
      %v895 = vxor.u32 %v877, 2147483648
      %v896 = vmul.f32 %v880, 1.442695
      %v897 = vpow.pop %v896
      %v898 = vmul.f32 %v881, 1.442695
      %v899 = vpow.pop %v898
      %v900 = vmul.f32 %v882, 1.442695
      %v901 = vpow.pop %v900
      %v902 = vmul.f32 %v883, 1.442695
      %v903 = vpow.pop %v902
      %v904 = vmul.f32 %v884, 1.442695
      %v905 = vpow.pop %v904
      %v906 = vmul.f32 %v885, 1.442695
      %v907 = vpow.pop %v906
      %v908 = vmul.f32 %v886, 1.442695
      %v909 = vpow.pop %v908
      %v910 = vmul.f32 %v887, 1.442695
      %v911 = vpow.pop %v910
      %v912 = vmul.f32 %v888, 1.442695
      %v913 = vpow.pop %v912
      %v914 = vmul.f32 %v889, 1.442695
      %v915 = vpow.pop %v914
      %v916 = vmul.f32 %v890, 1.442695
      %v917 = vpow.pop %v916
      %v918 = vmul.f32 %v891, 1.442695
      %v919 = vpow.pop %v918
      %v920 = vmul.f32 %v892, 1.442695
      %v921 = vpow.pop %v920
      %v922 = vmul.f32 %v893, 1.442695
      %v923 = vpow.pop %v922
      %v924 = vmul.f32 %v894, 1.442695
      %v925 = vpow.pop %v924
      %v926 = vmul.f32 %v895, 1.442695
      %v927 = vpow.pop %v926
      %v928 = vadd.f32 %v897, 1.0
      %v929 = vadd.f32 %v899, 1.0
      %v930 = vadd.f32 %v901, 1.0
      %v931 = vadd.f32 %v903, 1.0
      %v932 = vadd.f32 %v905, 1.0
      %v933 = vadd.f32 %v907, 1.0
      %v934 = vadd.f32 %v909, 1.0
      %v935 = vadd.f32 %v911, 1.0
      %v936 = vadd.f32 %v913, 1.0
      %v937 = vadd.f32 %v915, 1.0
      %v938 = vadd.f32 %v917, 1.0
      %v939 = vadd.f32 %v919, 1.0
      %v940 = vadd.f32 %v921, 1.0
      %v941 = vadd.f32 %v923, 1.0
      %v942 = vadd.f32 %v925, 1.0
      %v943 = vadd.f32 %v927, 1.0
      %v944 = vrcp.pop %v928
      %v945 = vmul.f32 1.0, %v944
      %v946 = vrcp.pop %v929
      %v947 = vmul.f32 1.0, %v946
      %v948 = vrcp.pop %v930
      %v949 = vmul.f32 1.0, %v948
      %v950 = vrcp.pop %v931
      %v951 = vmul.f32 1.0, %v950
      %v952 = vrcp.pop %v932
      %v953 = vmul.f32 1.0, %v952
      %v954 = vrcp.pop %v933
      %v955 = vmul.f32 1.0, %v954
      %v956 = vrcp.pop %v934
      %v957 = vmul.f32 1.0, %v956
      %v958 = vrcp.pop %v935
      %v959 = vmul.f32 1.0, %v958
      %v960 = vrcp.pop %v936
      %v961 = vmul.f32 1.0, %v960
      %v962 = vrcp.pop %v937
      %v963 = vmul.f32 1.0, %v962
      %v964 = vrcp.pop %v938
      %v965 = vmul.f32 1.0, %v964
      %v966 = vrcp.pop %v939
      %v967 = vmul.f32 1.0, %v966
      %v968 = vrcp.pop %v940
      %v969 = vmul.f32 1.0, %v968
      %v970 = vrcp.pop %v941
      %v971 = vmul.f32 1.0, %v970
      %v972 = vrcp.pop %v942
      %v973 = vmul.f32 1.0, %v972
      %v974 = vrcp.pop %v943
      %v975 = vmul.f32 1.0, %v974
      %v976 = vmul.f32 %v802, %v945
      %v977 = vmul.f32 %v807, %v947
      %v978 = vmul.f32 %v812, %v949
      %v979 = vmul.f32 %v817, %v951
      %v980 = vmul.f32 %v822, %v953
      %v981 = vmul.f32 %v827, %v955
      %v982 = vmul.f32 %v832, %v957
      %v983 = vmul.f32 %v837, %v959
      %v984 = vmul.f32 %v842, %v961
      %v985 = vmul.f32 %v847, %v963
      %v986 = vmul.f32 %v852, %v965
      %v987 = vmul.f32 %v857, %v967
      %v988 = vmul.f32 %v862, %v969
      %v989 = vmul.f32 %v867, %v971
      %v990 = vmul.f32 %v872, %v973
      %v991 = vmul.f32 %v877, %v975
      %992 = vmatprep.subr.mxu0 0.0
      %993 = vmatpush1.msra.mxu0 %v991
      %994 = vmatprep.subr.mxu0 0.0
      %995 = vmatpush1.msra.mxu0 %v990
      %996 = vmatprep.subr.mxu0 0.0
      %997 = vmatpush1.msra.mxu0 %v989
      %998 = vmatprep.subr.mxu0 0.0
      %999 = vmatpush1.msra.mxu0 %v988
      %1000 = vmatprep.subr.mxu0 0.0
      %1001 = vmatpush1.msra.mxu0 %v987
      %1002 = vmatprep.subr.mxu0 0.0
      %1003 = vmatpush1.msra.mxu0 %v986
      %1004 = vmatprep.subr.mxu0 0.0
      %1005 = vmatpush1.msra.mxu0 %v985
      %1006 = vmatprep.subr.mxu0 0.0
      %1007 = vmatpush1.msra.mxu0 %v984
      %1008 = vmatprep.subr.mxu0 0.0
      %1009 = vmatpush1.msra.mxu0 %v983
      %1010 = vmatprep.subr.mxu0 0.0
      %1011 = vmatpush1.msra.mxu0 %v982
      %1012 = vmatprep.subr.mxu0 0.0
      %1013 = vmatpush1.msra.mxu0 %v981
      %1014 = vmatprep.subr.mxu0 0.0
      %1015 = vmatpush1.msra.mxu0 %v980
      %1016 = vmatprep.subr.mxu0 0.0
      %1017 = vmatpush1.msra.mxu0 %v979
      %1018 = vmatprep.subr.mxu0 0.0
      %1019 = vmatpush1.msra.mxu0 %v978
      %1020 = vmatprep.subr.mxu0 0.0
      %1021 = vmatpush1.msra.mxu0 %v977
      %1022 = vmatprep.subr.mxu0 0.0
      %1023 = vmatpush1.msra.mxu0 %v976
      %1024 = vmatprep.subr.mxu0 0.0
      %1025 = vmatpush2.msra.mxu0 0.0
      %1026 = vmatprep.subr.mxu0 0.0
      %1027 = vmatpush2.msra.mxu0 0.0
      %1028 = vmatprep.subr.mxu0 0.0
      %1029 = vmatpush2.msra.mxu0 0.0
      %1030 = vmatprep.subr.mxu0 0.0
      %1031 = vmatpush2.msra.mxu0 0.0
      %1032 = vmatprep.subr.mxu0 0.0
      %1033 = vmatpush2.msra.mxu0 0.0
      %1034 = vmatprep.subr.mxu0 0.0
      %1035 = vmatpush2.msra.mxu0 0.0
      %1036 = vmatprep.subr.mxu0 0.0
      %1037 = vmatpush2.msra.mxu0 0.0
      %1038 = vmatprep.subr.mxu0 0.0
      %1039 = vmatpush2.msra.mxu0 0.0
      %1040 = vmatprep.subr.mxu0 0.0
      %1041 = vmatpush2.msra.mxu0 0.0
      %1042 = vmatprep.subr.mxu0 0.0
      %1043 = vmatpush2.msra.mxu0 0.0
      %1044 = vmatprep.subr.mxu0 0.0
      %1045 = vmatpush2.msra.mxu0 0.0
      %1046 = vmatprep.subr.mxu0 0.0
      %1047 = vmatpush2.msra.mxu0 0.0
      %1048 = vmatprep.subr.mxu0 0.0
      %1049 = vmatpush2.msra.mxu0 0.0
      %1050 = vmatprep.subr.mxu0 0.0
      %1051 = vmatpush2.msra.mxu0 0.0
      %1052 = vmatprep.subr.mxu0 0.0
      %1053 = vmatpush2.msra.mxu0 0.0
      %1054 = vmatprep.subr.mxu0 0.0
      %1055 = vmatpush2.msra.mxu0 0.0
      %1056 = vmatprep.mubr.f32.mxu0 0.0
      %1057 = vmatmul.mubr.f32.gmra.mxu0 %v271
      %v1058 = vpop.f32.mrf.mxu0
      %v1059 = vadd.f32 0.0, %v1058
      %v1060 = vpop.f32.mrf.mxu0
      %1061 = vmatprep.mubr.f32.mxu0 0.0
      %1062 = vmatmul.mubr.f32.gmra.mxu0 %v272
      %v1063 = vpop.f32.mrf.mxu0
      %v1064 = vadd.f32 0.0, %v1063
      %v1065 = vpop.f32.mrf.mxu0
      %1066 = vdwg.mxu0
      %1067 = vmatprep.subr.mxu0 0.0
      %1068 = vmatpush1.msra.mxu0 0.0
      %1069 = vmatprep.subr.mxu0 0.0
      %1070 = vmatpush1.msra.mxu0 0.0
      %1071 = vmatprep.subr.mxu0 0.0
      %1072 = vmatpush1.msra.mxu0 0.0
      %1073 = vmatprep.subr.mxu0 0.0
      %1074 = vmatpush1.msra.mxu0 0.0
      %1075 = vmatprep.subr.mxu0 0.0
      %1076 = vmatpush1.msra.mxu0 0.0
      %1077 = vmatprep.subr.mxu0 0.0
      %1078 = vmatpush1.msra.mxu0 0.0
      %1079 = vmatprep.subr.mxu0 0.0
      %1080 = vmatpush1.msra.mxu0 0.0
      %1081 = vmatprep.subr.mxu0 0.0
      %1082 = vmatpush1.msra.mxu0 0.0
      %1083 = vmatprep.subr.mxu0 0.0
      %1084 = vmatpush1.msra.mxu0 0.0
      %1085 = vmatprep.subr.mxu0 0.0
      %1086 = vmatpush1.msra.mxu0 0.0
      %1087 = vmatprep.subr.mxu0 0.0
      %1088 = vmatpush1.msra.mxu0 0.0
      %1089 = vmatprep.subr.mxu0 0.0
      %1090 = vmatpush1.msra.mxu0 0.0
      %1091 = vmatprep.subr.mxu0 0.0
      %1092 = vmatpush1.msra.mxu0 0.0
      %1093 = vmatprep.subr.mxu0 0.0
      %1094 = vmatpush1.msra.mxu0 0.0
      %1095 = vmatprep.subr.mxu0 0.0
      %1096 = vmatpush1.msra.mxu0 %v378
      %1097 = vmatprep.subr.mxu0 0.0
      %1098 = vmatpush1.msra.mxu0 %v373
      %1099 = vmatprep.subr.mxu0 0.0
      %1100 = vmatpush2.msra.mxu0 0.0
      %1101 = vmatprep.subr.mxu0 0.0
      %1102 = vmatpush2.msra.mxu0 0.0
      %1103 = vmatprep.subr.mxu0 0.0
      %1104 = vmatpush2.msra.mxu0 0.0
      %1105 = vmatprep.subr.mxu0 0.0
      %1106 = vmatpush2.msra.mxu0 0.0
      %1107 = vmatprep.subr.mxu0 0.0
      %1108 = vmatpush2.msra.mxu0 0.0
      %1109 = vmatprep.subr.mxu0 0.0
      %1110 = vmatpush2.msra.mxu0 0.0
      %1111 = vmatprep.subr.mxu0 0.0
      %1112 = vmatpush2.msra.mxu0 0.0
      %1113 = vmatprep.subr.mxu0 0.0
      %1114 = vmatpush2.msra.mxu0 0.0
      %1115 = vmatprep.subr.mxu0 0.0
      %1116 = vmatpush2.msra.mxu0 0.0
      %1117 = vmatprep.subr.mxu0 0.0
      %1118 = vmatpush2.msra.mxu0 0.0
      %1119 = vmatprep.subr.mxu0 0.0
      %1120 = vmatpush2.msra.mxu0 0.0
      %1121 = vmatprep.subr.mxu0 0.0
      %1122 = vmatpush2.msra.mxu0 0.0
      %1123 = vmatprep.subr.mxu0 0.0
      %1124 = vmatpush2.msra.mxu0 0.0
      %1125 = vmatprep.subr.mxu0 0.0
      %1126 = vmatpush2.msra.mxu0 0.0
      %1127 = vmatprep.subr.mxu0 0.0
      %1128 = vmatpush2.msra.mxu0 0.0
      %1129 = vmatprep.subr.mxu0 0.0
      %1130 = vmatpush2.msra.mxu0 0.0
      %1131 = vmatprep.mubr.f32.mxu0 0.0
      %1132 = vmatmul.mubr.f32.gmra.mxu0 %v382
      %v1133 = vpop.f32.mrf.mxu0
      %v1134 = vadd.f32 0.0, %v1133
      %v1135 = vpop.f32.mrf.mxu0
      %1136 = vmatprep.mubr.f32.mxu0 0.0
      %1137 = vmatmul.mubr.f32.gmra.mxu0 %v385
      %v1138 = vpop.f32.mrf.mxu0
      %v1139 = vadd.f32 0.0, %v1138
      %v1140 = vpop.f32.mrf.mxu0
      %1141 = vmatprep.mubr.f32.mxu0 0.0
      %1142 = vmatmul.mubr.f32.gmra.mxu0 %v388
      %v1143 = vpop.f32.mrf.mxu0
      %v1144 = vadd.f32 0.0, %v1143
      %v1145 = vpop.f32.mrf.mxu0
      %1146 = vmatprep.mubr.f32.mxu0 0.0
      %1147 = vmatmul.mubr.f32.gmra.mxu0 %v391
      %v1148 = vpop.f32.mrf.mxu0
      %v1149 = vadd.f32 0.0, %v1148
      %v1150 = vpop.f32.mrf.mxu0
      %1151 = vmatprep.mubr.f32.mxu0 0.0
      %1152 = vmatmul.mubr.f32.gmra.mxu0 %v394
      %v1153 = vpop.f32.mrf.mxu0
      %v1154 = vadd.f32 0.0, %v1153
      %v1155 = vpop.f32.mrf.mxu0
      %1156 = vmatprep.mubr.f32.mxu0 0.0
      %1157 = vmatmul.mubr.f32.gmra.mxu0 %v397
      %v1158 = vpop.f32.mrf.mxu0
      %v1159 = vadd.f32 0.0, %v1158
      %v1160 = vpop.f32.mrf.mxu0
      %1161 = vmatprep.mubr.f32.mxu0 0.0
      %1162 = vmatmul.mubr.f32.gmra.mxu0 %v400
      %v1163 = vpop.f32.mrf.mxu0
      %v1164 = vadd.f32 0.0, %v1163
      %v1165 = vpop.f32.mrf.mxu0
      %1166 = vmatprep.mubr.f32.mxu0 0.0
      %1167 = vmatmul.mubr.f32.gmra.mxu0 %v403
      %v1168 = vpop.f32.mrf.mxu0
      %v1169 = vadd.f32 0.0, %v1168
      %v1170 = vpop.f32.mrf.mxu0
      %1171 = vmatprep.mubr.f32.mxu0 0.0
      %1172 = vmatmul.mubr.f32.gmra.mxu0 %v406
      %v1173 = vpop.f32.mrf.mxu0
      %v1174 = vadd.f32 0.0, %v1173
      %v1175 = vpop.f32.mrf.mxu0
      %1176 = vmatprep.mubr.f32.mxu0 0.0
      %1177 = vmatmul.mubr.f32.gmra.mxu0 %v409
      %v1178 = vpop.f32.mrf.mxu0
      %v1179 = vadd.f32 0.0, %v1178
      %v1180 = vpop.f32.mrf.mxu0
      %1181 = vmatprep.mubr.f32.mxu0 0.0
      %1182 = vmatmul.mubr.f32.gmra.mxu0 %v412
      %v1183 = vpop.f32.mrf.mxu0
      %v1184 = vadd.f32 0.0, %v1183
      %v1185 = vpop.f32.mrf.mxu0
      %1186 = vmatprep.mubr.f32.mxu0 0.0
      %1187 = vmatmul.mubr.f32.gmra.mxu0 %v415
      %v1188 = vpop.f32.mrf.mxu0
      %v1189 = vadd.f32 0.0, %v1188
      %v1190 = vpop.f32.mrf.mxu0
      %1191 = vmatprep.mubr.f32.mxu0 0.0
      %1192 = vmatmul.mubr.f32.gmra.mxu0 %v418
      %v1193 = vpop.f32.mrf.mxu0
      %v1194 = vadd.f32 0.0, %v1193
      %v1195 = vpop.f32.mrf.mxu0
      %1196 = vmatprep.mubr.f32.mxu0 0.0
      %1197 = vmatmul.mubr.f32.gmra.mxu0 %v421
      %v1198 = vpop.f32.mrf.mxu0
      %v1199 = vadd.f32 0.0, %v1198
      %v1200 = vpop.f32.mrf.mxu0
      %1201 = vmatprep.mubr.f32.mxu0 0.0
      %1202 = vmatmul.mubr.f32.gmra.mxu0 %v424
      %v1203 = vpop.f32.mrf.mxu0
      %v1204 = vadd.f32 0.0, %v1203
      %v1205 = vpop.f32.mrf.mxu0
      %1206 = vmatprep.mubr.f32.mxu0 0.0
      %1207 = vmatmul.mubr.f32.gmra.mxu0 %v427
      %v1208 = vpop.f32.mrf.mxu0
      %v1209 = vadd.f32 0.0, %v1208
      %v1210 = vpop.f32.mrf.mxu0
      %1211 = vdwg.mxu0
      %v1212 = vxor.u32 %v1134, 2147483648
      %v1213 = vxor.u32 %v1139, 2147483648
      %v1214 = vxor.u32 %v1144, 2147483648
      %v1215 = vxor.u32 %v1149, 2147483648
      %v1216 = vxor.u32 %v1154, 2147483648
      %v1217 = vxor.u32 %v1159, 2147483648
      %v1218 = vxor.u32 %v1164, 2147483648
      %v1219 = vxor.u32 %v1169, 2147483648
      %v1220 = vxor.u32 %v1174, 2147483648
      %v1221 = vxor.u32 %v1179, 2147483648
      %v1222 = vxor.u32 %v1184, 2147483648
      %v1223 = vxor.u32 %v1189, 2147483648
      %v1224 = vxor.u32 %v1194, 2147483648
      %v1225 = vxor.u32 %v1199, 2147483648
      %v1226 = vxor.u32 %v1204, 2147483648
      %v1227 = vxor.u32 %v1209, 2147483648
      %v1228 = vmul.f32 %v1212, 1.442695
      %v1229 = vpow.pop %v1228
      %v1230 = vmul.f32 %v1213, 1.442695
      %v1231 = vpow.pop %v1230
      %v1232 = vmul.f32 %v1214, 1.442695
      %v1233 = vpow.pop %v1232
      %v1234 = vmul.f32 %v1215, 1.442695
      %v1235 = vpow.pop %v1234
      %v1236 = vmul.f32 %v1216, 1.442695
      %v1237 = vpow.pop %v1236
      %v1238 = vmul.f32 %v1217, 1.442695
      %v1239 = vpow.pop %v1238
      %v1240 = vmul.f32 %v1218, 1.442695
      %v1241 = vpow.pop %v1240
      %v1242 = vmul.f32 %v1219, 1.442695
      %v1243 = vpow.pop %v1242
      %v1244 = vmul.f32 %v1220, 1.442695
      %v1245 = vpow.pop %v1244
      %v1246 = vmul.f32 %v1221, 1.442695
      %v1247 = vpow.pop %v1246
      %v1248 = vmul.f32 %v1222, 1.442695
      %v1249 = vpow.pop %v1248
      %v1250 = vmul.f32 %v1223, 1.442695
      %v1251 = vpow.pop %v1250
      %v1252 = vmul.f32 %v1224, 1.442695
      %v1253 = vpow.pop %v1252
      %v1254 = vmul.f32 %v1225, 1.442695
      %v1255 = vpow.pop %v1254
      %v1256 = vmul.f32 %v1226, 1.442695
      %v1257 = vpow.pop %v1256
      %v1258 = vmul.f32 %v1227, 1.442695
      %v1259 = vpow.pop %v1258
      %v1260 = vadd.f32 %v1229, 1.0
      %v1261 = vadd.f32 %v1231, 1.0
      %v1262 = vadd.f32 %v1233, 1.0
      %v1263 = vadd.f32 %v1235, 1.0
      %v1264 = vadd.f32 %v1237, 1.0
      %v1265 = vadd.f32 %v1239, 1.0
      %v1266 = vadd.f32 %v1241, 1.0
      %v1267 = vadd.f32 %v1243, 1.0
      %v1268 = vadd.f32 %v1245, 1.0
      %v1269 = vadd.f32 %v1247, 1.0
      %v1270 = vadd.f32 %v1249, 1.0
      %v1271 = vadd.f32 %v1251, 1.0
      %v1272 = vadd.f32 %v1253, 1.0
      %v1273 = vadd.f32 %v1255, 1.0
      %v1274 = vadd.f32 %v1257, 1.0
      %v1275 = vadd.f32 %v1259, 1.0
      %v1276 = vrcp.pop %v1260
      %v1277 = vmul.f32 1.0, %v1276
      %v1278 = vrcp.pop %v1261
      %v1279 = vmul.f32 1.0, %v1278
      %v1280 = vrcp.pop %v1262
      %v1281 = vmul.f32 1.0, %v1280
      %v1282 = vrcp.pop %v1263
      %v1283 = vmul.f32 1.0, %v1282
      %v1284 = vrcp.pop %v1264
      %v1285 = vmul.f32 1.0, %v1284
      %v1286 = vrcp.pop %v1265
      %v1287 = vmul.f32 1.0, %v1286
      %v1288 = vrcp.pop %v1266
      %v1289 = vmul.f32 1.0, %v1288
      %v1290 = vrcp.pop %v1267
      %v1291 = vmul.f32 1.0, %v1290
      %v1292 = vrcp.pop %v1268
      %v1293 = vmul.f32 1.0, %v1292
      %v1294 = vrcp.pop %v1269
      %v1295 = vmul.f32 1.0, %v1294
      %v1296 = vrcp.pop %v1270
      %v1297 = vmul.f32 1.0, %v1296
      %v1298 = vrcp.pop %v1271
      %v1299 = vmul.f32 1.0, %v1298
      %v1300 = vrcp.pop %v1272
      %v1301 = vmul.f32 1.0, %v1300
      %v1302 = vrcp.pop %v1273
      %v1303 = vmul.f32 1.0, %v1302
      %v1304 = vrcp.pop %v1274
      %v1305 = vmul.f32 1.0, %v1304
      %v1306 = vrcp.pop %v1275
      %v1307 = vmul.f32 1.0, %v1306
      %v1308 = vmul.f32 %v1134, %v1277
      %v1309 = vmul.f32 %v1139, %v1279
      %v1310 = vmul.f32 %v1144, %v1281
      %v1311 = vmul.f32 %v1149, %v1283
      %v1312 = vmul.f32 %v1154, %v1285
      %v1313 = vmul.f32 %v1159, %v1287
      %v1314 = vmul.f32 %v1164, %v1289
      %v1315 = vmul.f32 %v1169, %v1291
      %v1316 = vmul.f32 %v1174, %v1293
      %v1317 = vmul.f32 %v1179, %v1295
      %v1318 = vmul.f32 %v1184, %v1297
      %v1319 = vmul.f32 %v1189, %v1299
      %v1320 = vmul.f32 %v1194, %v1301
      %v1321 = vmul.f32 %v1199, %v1303
      %v1322 = vmul.f32 %v1204, %v1305
      %v1323 = vmul.f32 %v1209, %v1307
      %v1325 = vsel %vm686, %v1308, 0
      %v1328 = vsel %vm686, %v1309, 0
      %v1331 = vsel %vm686, %v1310, 0
      %v1334 = vsel %vm686, %v1311, 0
      %v1337 = vsel %vm686, %v1312, 0
      %v1340 = vsel %vm686, %v1313, 0
      %v1343 = vsel %vm686, %v1314, 0
      %v1346 = vsel %vm686, %v1315, 0
      %v1349 = vsel %vm686, %v1316, 0
      %v1352 = vsel %vm686, %v1317, 0
      %v1355 = vsel %vm686, %v1318, 0
      %v1358 = vsel %vm686, %v1319, 0
      %v1361 = vsel %vm686, %v1320, 0
      %v1364 = vsel %vm686, %v1321, 0
      %v1367 = vsel %vm686, %v1322, 0
      %v1370 = vsel %vm686, %v1323, 0
      %1372 = vmatprep.subr.mxu0 0.0
      %1373 = vmatpush1.msra.mxu0 0.0
      %1374 = vmatprep.subr.mxu0 0.0
      %1375 = vmatpush1.msra.mxu0 0.0
      %1376 = vmatprep.subr.mxu0 0.0
      %1377 = vmatpush1.msra.mxu0 0.0
      %1378 = vmatprep.subr.mxu0 0.0
      %1379 = vmatpush1.msra.mxu0 0.0
      %1380 = vmatprep.subr.mxu0 0.0
      %1381 = vmatpush1.msra.mxu0 0.0
      %1382 = vmatprep.subr.mxu0 0.0
      %1383 = vmatpush1.msra.mxu0 0.0
      %1384 = vmatprep.subr.mxu0 0.0
      %1385 = vmatpush1.msra.mxu0 0.0
      %1386 = vmatprep.subr.mxu0 0.0
      %1387 = vmatpush1.msra.mxu0 0.0
      %1388 = vmatprep.subr.mxu0 0.0
      %1389 = vmatpush1.msra.mxu0 0.0
      %1390 = vmatprep.subr.mxu0 0.0
      %1391 = vmatpush1.msra.mxu0 0.0
      %1392 = vmatprep.subr.mxu0 0.0
      %1393 = vmatpush1.msra.mxu0 0.0
      %1394 = vmatprep.subr.mxu0 0.0
      %1395 = vmatpush1.msra.mxu0 0.0
      %1396 = vmatprep.subr.mxu0 0.0
      %1397 = vmatpush1.msra.mxu0 %v276
      %1398 = vmatprep.subr.mxu0 0.0
      %1399 = vmatpush1.msra.mxu0 %v275
      %1400 = vmatprep.subr.mxu0 0.0
      %1401 = vmatpush1.msra.mxu0 %v274
      %1402 = vmatprep.subr.mxu0 0.0
      %1403 = vmatpush1.msra.mxu0 %v273
      %1404 = vmatprep.subr.mxu0 0.0
      %1405 = vmatpush2.msra.mxu0 0.0
      %1406 = vmatprep.subr.mxu0 0.0
      %1407 = vmatpush2.msra.mxu0 0.0
      %1408 = vmatprep.subr.mxu0 0.0
      %1409 = vmatpush2.msra.mxu0 0.0
      %1410 = vmatprep.subr.mxu0 0.0
      %1411 = vmatpush2.msra.mxu0 0.0
      %1412 = vmatprep.subr.mxu0 0.0
      %1413 = vmatpush2.msra.mxu0 0.0
      %1414 = vmatprep.subr.mxu0 0.0
      %1415 = vmatpush2.msra.mxu0 0.0
      %1416 = vmatprep.subr.mxu0 0.0
      %1417 = vmatpush2.msra.mxu0 0.0
      %1418 = vmatprep.subr.mxu0 0.0
      %1419 = vmatpush2.msra.mxu0 0.0
      %1420 = vmatprep.subr.mxu0 0.0
      %1421 = vmatpush2.msra.mxu0 0.0
      %1422 = vmatprep.subr.mxu0 0.0
      %1423 = vmatpush2.msra.mxu0 0.0
      %1424 = vmatprep.subr.mxu0 0.0
      %1425 = vmatpush2.msra.mxu0 0.0
      %1426 = vmatprep.subr.mxu0 0.0
      %1427 = vmatpush2.msra.mxu0 0.0
      %1428 = vmatprep.subr.mxu0 0.0
      %1429 = vmatpush2.msra.mxu0 0.0
      %1430 = vmatprep.subr.mxu0 0.0
      %1431 = vmatpush2.msra.mxu0 0.0
      %1432 = vmatprep.subr.mxu0 0.0
      %1433 = vmatpush2.msra.mxu0 0.0
      %1434 = vmatprep.subr.mxu0 0.0
      %1435 = vmatpush2.msra.mxu0 0.0
      %1436 = vmatprep.mubr.f32.mxu0 0.0
      %1437 = vmatmul.mubr.f32.gmra.mxu0 %v1325
      %v1438 = vpop.f32.mrf.mxu0
      %v1439 = vadd.f32 0.0, %v1438
      %v1440 = vpop.f32.mrf.mxu0
      %1441 = vmatprep.mubr.f32.mxu0 0.0
      %1442 = vmatmul.mubr.f32.gmra.mxu0 %v1328
      %v1443 = vpop.f32.mrf.mxu0
      %v1444 = vadd.f32 0.0, %v1443
      %v1445 = vpop.f32.mrf.mxu0
      %1446 = vmatprep.mubr.f32.mxu0 0.0
      %1447 = vmatmul.mubr.f32.gmra.mxu0 %v1331
      %v1448 = vpop.f32.mrf.mxu0
      %v1449 = vadd.f32 0.0, %v1448
      %v1450 = vpop.f32.mrf.mxu0
      %1451 = vmatprep.mubr.f32.mxu0 0.0
      %1452 = vmatmul.mubr.f32.gmra.mxu0 %v1334
      %v1453 = vpop.f32.mrf.mxu0
      %v1454 = vadd.f32 0.0, %v1453
      %v1455 = vpop.f32.mrf.mxu0
      %1456 = vmatprep.mubr.f32.mxu0 0.0
      %1457 = vmatmul.mubr.f32.gmra.mxu0 %v1337
      %v1458 = vpop.f32.mrf.mxu0
      %v1459 = vadd.f32 0.0, %v1458
      %v1460 = vpop.f32.mrf.mxu0
      %1461 = vmatprep.mubr.f32.mxu0 0.0
      %1462 = vmatmul.mubr.f32.gmra.mxu0 %v1340
      %v1463 = vpop.f32.mrf.mxu0
      %v1464 = vadd.f32 0.0, %v1463
      %v1465 = vpop.f32.mrf.mxu0
      %1466 = vmatprep.mubr.f32.mxu0 0.0
      %1467 = vmatmul.mubr.f32.gmra.mxu0 %v1343
      %v1468 = vpop.f32.mrf.mxu0
      %v1469 = vadd.f32 0.0, %v1468
      %v1470 = vpop.f32.mrf.mxu0
      %1471 = vmatprep.mubr.f32.mxu0 0.0
      %1472 = vmatmul.mubr.f32.gmra.mxu0 %v1346
      %v1473 = vpop.f32.mrf.mxu0
      %v1474 = vadd.f32 0.0, %v1473
      %v1475 = vpop.f32.mrf.mxu0
      %1476 = vmatprep.mubr.f32.mxu0 0.0
      %1477 = vmatmul.mubr.f32.gmra.mxu0 %v1349
      %v1478 = vpop.f32.mrf.mxu0
      %v1479 = vadd.f32 0.0, %v1478
      %v1480 = vpop.f32.mrf.mxu0
      %1481 = vmatprep.mubr.f32.mxu0 0.0
      %1482 = vmatmul.mubr.f32.gmra.mxu0 %v1352
      %v1483 = vpop.f32.mrf.mxu0
      %v1484 = vadd.f32 0.0, %v1483
      %v1485 = vpop.f32.mrf.mxu0
      %1486 = vmatprep.mubr.f32.mxu0 0.0
      %1487 = vmatmul.mubr.f32.gmra.mxu0 %v1355
      %v1488 = vpop.f32.mrf.mxu0
      %v1489 = vadd.f32 0.0, %v1488
      %v1490 = vpop.f32.mrf.mxu0
      %1491 = vmatprep.mubr.f32.mxu0 0.0
      %1492 = vmatmul.mubr.f32.gmra.mxu0 %v1358
      %v1493 = vpop.f32.mrf.mxu0
      %v1494 = vadd.f32 0.0, %v1493
      %v1495 = vpop.f32.mrf.mxu0
      %1496 = vmatprep.mubr.f32.mxu0 0.0
      %1497 = vmatmul.mubr.f32.gmra.mxu0 %v1361
      %v1498 = vpop.f32.mrf.mxu0
      %v1499 = vadd.f32 0.0, %v1498
      %v1500 = vpop.f32.mrf.mxu0
      %1501 = vmatprep.mubr.f32.mxu0 0.0
      %1502 = vmatmul.mubr.f32.gmra.mxu0 %v1364
      %v1503 = vpop.f32.mrf.mxu0
      %v1504 = vadd.f32 0.0, %v1503
      %v1505 = vpop.f32.mrf.mxu0
      %1506 = vmatprep.mubr.f32.mxu0 0.0
      %1507 = vmatmul.mubr.f32.gmra.mxu0 %v1367
      %v1508 = vpop.f32.mrf.mxu0
      %v1509 = vadd.f32 0.0, %v1508
      %v1510 = vpop.f32.mrf.mxu0
      %1511 = vmatprep.mubr.f32.mxu0 0.0
      %1512 = vmatmul.mubr.f32.gmra.mxu0 %v1370
      %v1513 = vpop.f32.mrf.mxu0
      %v1514 = vadd.f32 0.0, %v1513
      %v1515 = vpop.f32.mrf.mxu0
      %1516 = vdwg.mxu0
      %v1517 = vxor.u32 %v1439, 2147483648
      %v1518 = vxor.u32 %v1444, 2147483648
      %v1519 = vxor.u32 %v1449, 2147483648
      %v1520 = vxor.u32 %v1454, 2147483648
      %v1521 = vxor.u32 %v1459, 2147483648
      %v1522 = vxor.u32 %v1464, 2147483648
      %v1523 = vxor.u32 %v1469, 2147483648
      %v1524 = vxor.u32 %v1474, 2147483648
      %v1525 = vxor.u32 %v1479, 2147483648
      %v1526 = vxor.u32 %v1484, 2147483648
      %v1527 = vxor.u32 %v1489, 2147483648
      %v1528 = vxor.u32 %v1494, 2147483648
      %v1529 = vxor.u32 %v1499, 2147483648
      %v1530 = vxor.u32 %v1504, 2147483648
      %v1531 = vxor.u32 %v1509, 2147483648
      %v1532 = vxor.u32 %v1514, 2147483648
      %v1533 = vmul.f32 %v1517, 1.442695
      %v1534 = vpow.pop %v1533
      %v1535 = vmul.f32 %v1518, 1.442695
      %v1536 = vpow.pop %v1535
      %v1537 = vmul.f32 %v1519, 1.442695
      %v1538 = vpow.pop %v1537
      %v1539 = vmul.f32 %v1520, 1.442695
      %v1540 = vpow.pop %v1539
      %v1541 = vmul.f32 %v1521, 1.442695
      %v1542 = vpow.pop %v1541
      %v1543 = vmul.f32 %v1522, 1.442695
      %v1544 = vpow.pop %v1543
      %v1545 = vmul.f32 %v1523, 1.442695
      %v1546 = vpow.pop %v1545
      %v1547 = vmul.f32 %v1524, 1.442695
      %v1548 = vpow.pop %v1547
      %v1549 = vmul.f32 %v1525, 1.442695
      %v1550 = vpow.pop %v1549
      %v1551 = vmul.f32 %v1526, 1.442695
      %v1552 = vpow.pop %v1551
      %v1553 = vmul.f32 %v1527, 1.442695
      %v1554 = vpow.pop %v1553
      %v1555 = vmul.f32 %v1528, 1.442695
      %v1556 = vpow.pop %v1555
      %v1557 = vmul.f32 %v1529, 1.442695
      %v1558 = vpow.pop %v1557
      %v1559 = vmul.f32 %v1530, 1.442695
      %v1560 = vpow.pop %v1559
      %v1561 = vmul.f32 %v1531, 1.442695
      %v1562 = vpow.pop %v1561
      %v1563 = vmul.f32 %v1532, 1.442695
      %v1564 = vpow.pop %v1563
      %v1565 = vadd.f32 %v1534, 1.0
      %v1566 = vadd.f32 %v1536, 1.0
      %v1567 = vadd.f32 %v1538, 1.0
      %v1568 = vadd.f32 %v1540, 1.0
      %v1569 = vadd.f32 %v1542, 1.0
      %v1570 = vadd.f32 %v1544, 1.0
      %v1571 = vadd.f32 %v1546, 1.0
      %v1572 = vadd.f32 %v1548, 1.0
      %v1573 = vadd.f32 %v1550, 1.0
      %v1574 = vadd.f32 %v1552, 1.0
      %v1575 = vadd.f32 %v1554, 1.0
      %v1576 = vadd.f32 %v1556, 1.0
      %v1577 = vadd.f32 %v1558, 1.0
      %v1578 = vadd.f32 %v1560, 1.0
      %v1579 = vadd.f32 %v1562, 1.0
      %v1580 = vadd.f32 %v1564, 1.0
      %v1581 = vrcp.pop %v1565
      %v1582 = vmul.f32 1.0, %v1581
      %v1583 = vrcp.pop %v1566
      %v1584 = vmul.f32 1.0, %v1583
      %v1585 = vrcp.pop %v1567
      %v1586 = vmul.f32 1.0, %v1585
      %v1587 = vrcp.pop %v1568
      %v1588 = vmul.f32 1.0, %v1587
      %v1589 = vrcp.pop %v1569
      %v1590 = vmul.f32 1.0, %v1589
      %v1591 = vrcp.pop %v1570
      %v1592 = vmul.f32 1.0, %v1591
      %v1593 = vrcp.pop %v1571
      %v1594 = vmul.f32 1.0, %v1593
      %v1595 = vrcp.pop %v1572
      %v1596 = vmul.f32 1.0, %v1595
      %v1597 = vrcp.pop %v1573
      %v1598 = vmul.f32 1.0, %v1597
      %v1599 = vrcp.pop %v1574
      %v1600 = vmul.f32 1.0, %v1599
      %v1601 = vrcp.pop %v1575
      %v1602 = vmul.f32 1.0, %v1601
      %v1603 = vrcp.pop %v1576
      %v1604 = vmul.f32 1.0, %v1603
      %v1605 = vrcp.pop %v1577
      %v1606 = vmul.f32 1.0, %v1605
      %v1607 = vrcp.pop %v1578
      %v1608 = vmul.f32 1.0, %v1607
      %v1609 = vrcp.pop %v1579
      %v1610 = vmul.f32 1.0, %v1609
      %v1611 = vrcp.pop %v1580
      %v1612 = vmul.f32 1.0, %v1611
      %v1613 = vmul.f32 %v1439, %v1582
      %v1614 = vmul.f32 %v1444, %v1584
      %v1615 = vmul.f32 %v1449, %v1586
      %v1616 = vmul.f32 %v1454, %v1588
      %v1617 = vmul.f32 %v1459, %v1590
      %v1618 = vmul.f32 %v1464, %v1592
      %v1619 = vmul.f32 %v1469, %v1594
      %v1620 = vmul.f32 %v1474, %v1596
      %v1621 = vmul.f32 %v1479, %v1598
      %v1622 = vmul.f32 %v1484, %v1600
      %v1623 = vmul.f32 %v1489, %v1602
      %v1624 = vmul.f32 %v1494, %v1604
      %v1625 = vmul.f32 %v1499, %v1606
      %v1626 = vmul.f32 %v1504, %v1608
      %v1627 = vmul.f32 %v1509, %v1610
      %v1628 = vmul.f32 %v1514, %v1612
      %1629 = vmatprep.subr.mxu0 0.0
      %1630 = vmatpush1.msra.mxu0 %v1628
      %1631 = vmatprep.subr.mxu0 0.0
      %1632 = vmatpush1.msra.mxu0 %v1627
      %1633 = vmatprep.subr.mxu0 0.0
      %1634 = vmatpush1.msra.mxu0 %v1626
      %1635 = vmatprep.subr.mxu0 0.0
      %1636 = vmatpush1.msra.mxu0 %v1625
      %1637 = vmatprep.subr.mxu0 0.0
      %1638 = vmatpush1.msra.mxu0 %v1624
      %1639 = vmatprep.subr.mxu0 0.0
      %1640 = vmatpush1.msra.mxu0 %v1623
      %1641 = vmatprep.subr.mxu0 0.0
      %1642 = vmatpush1.msra.mxu0 %v1622
      %1643 = vmatprep.subr.mxu0 0.0
      %1644 = vmatpush1.msra.mxu0 %v1621
      %1645 = vmatprep.subr.mxu0 0.0
      %1646 = vmatpush1.msra.mxu0 %v1620
      %1647 = vmatprep.subr.mxu0 0.0
      %1648 = vmatpush1.msra.mxu0 %v1619
      %1649 = vmatprep.subr.mxu0 0.0
      %1650 = vmatpush1.msra.mxu0 %v1618
      %1651 = vmatprep.subr.mxu0 0.0
      %1652 = vmatpush1.msra.mxu0 %v1617
      %1653 = vmatprep.subr.mxu0 0.0
      %1654 = vmatpush1.msra.mxu0 %v1616
      %1655 = vmatprep.subr.mxu0 0.0
      %1656 = vmatpush1.msra.mxu0 %v1615
      %1657 = vmatprep.subr.mxu0 0.0
      %1658 = vmatpush1.msra.mxu0 %v1614
      %1659 = vmatprep.subr.mxu0 0.0
      %1660 = vmatpush1.msra.mxu0 %v1613
      %1661 = vmatprep.subr.mxu0 0.0
      %1662 = vmatpush2.msra.mxu0 0.0
      %1663 = vmatprep.subr.mxu0 0.0
      %1664 = vmatpush2.msra.mxu0 0.0
      %1665 = vmatprep.subr.mxu0 0.0
      %1666 = vmatpush2.msra.mxu0 0.0
      %1667 = vmatprep.subr.mxu0 0.0
      %1668 = vmatpush2.msra.mxu0 0.0
      %1669 = vmatprep.subr.mxu0 0.0
      %1670 = vmatpush2.msra.mxu0 0.0
      %1671 = vmatprep.subr.mxu0 0.0
      %1672 = vmatpush2.msra.mxu0 0.0
      %1673 = vmatprep.subr.mxu0 0.0
      %1674 = vmatpush2.msra.mxu0 0.0
      %1675 = vmatprep.subr.mxu0 0.0
      %1676 = vmatpush2.msra.mxu0 0.0
      %1677 = vmatprep.subr.mxu0 0.0
      %1678 = vmatpush2.msra.mxu0 0.0
      %1679 = vmatprep.subr.mxu0 0.0
      %1680 = vmatpush2.msra.mxu0 0.0
      %1681 = vmatprep.subr.mxu0 0.0
      %1682 = vmatpush2.msra.mxu0 0.0
      %1683 = vmatprep.subr.mxu0 0.0
      %1684 = vmatpush2.msra.mxu0 0.0
      %1685 = vmatprep.subr.mxu0 0.0
      %1686 = vmatpush2.msra.mxu0 0.0
      %1687 = vmatprep.subr.mxu0 0.0
      %1688 = vmatpush2.msra.mxu0 0.0
      %1689 = vmatprep.subr.mxu0 0.0
      %1690 = vmatpush2.msra.mxu0 0.0
      %1691 = vmatprep.subr.mxu0 0.0
      %1692 = vmatpush2.msra.mxu0 0.0
      %1693 = vmatprep.mubr.f32.mxu0 0.0
      %1694 = vmatmul.mubr.f32.gmra.mxu0 %v271
      %v1695 = vpop.f32.mrf.mxu0
      %v1696 = vadd.f32 0.0, %v1695
      %v1697 = vpop.f32.mrf.mxu0
      %1698 = vmatprep.mubr.f32.mxu0 0.0
      %1699 = vmatmul.mubr.f32.gmra.mxu0 %v272
      %v1700 = vpop.f32.mrf.mxu0
      %v1701 = vadd.f32 0.0, %v1700
      %v1702 = vpop.f32.mrf.mxu0
      %1703 = vdwg.mxu0
      %v1704 = vld [vmem:[%s5] sm:$0xff]
      %v1705 = vld [vmem:[%s5 + $0x8] sm:$0xff]
      %v1706 = vld [vmem:[%s5 + $0x10] sm:$0xff]
      %v1707 = vld [vmem:[%s5 + $0x18] sm:$0xff]
      %v1709 = vsel %vm686, %v1059, 0
      %v1712 = vsel %vm686, %v1064, 0
      %v1715 = vsel %vm686, %v1696, 0
      %v1718 = vsel %vm686, %v1701, 0
      %1720 = vmatprep.subr.mxu0 0.0
      %1721 = vmatpush1.msra.mxu0 0.0
      %1722 = vmatprep.subr.mxu0 0.0
      %1723 = vmatpush1.msra.mxu0 0.0
      %1724 = vmatprep.subr.mxu0 0.0
      %1725 = vmatpush1.msra.mxu0 0.0
      %1726 = vmatprep.subr.mxu0 0.0
      %1727 = vmatpush1.msra.mxu0 0.0
      %1728 = vmatprep.subr.mxu0 0.0
      %1729 = vmatpush1.msra.mxu0 0.0
      %1730 = vmatprep.subr.mxu0 0.0
      %1731 = vmatpush1.msra.mxu0 0.0
      %1732 = vmatprep.subr.mxu0 0.0
      %1733 = vmatpush1.msra.mxu0 0.0
      %1734 = vmatprep.subr.mxu0 0.0
      %1735 = vmatpush1.msra.mxu0 0.0
      %1736 = vmatprep.subr.mxu0 0.0
      %1737 = vmatpush1.msra.mxu0 0.0
      %1738 = vmatprep.subr.mxu0 0.0
      %1739 = vmatpush1.msra.mxu0 0.0
      %1740 = vmatprep.subr.mxu0 0.0
      %1741 = vmatpush1.msra.mxu0 0.0
      %1742 = vmatprep.subr.mxu0 0.0
      %1743 = vmatpush1.msra.mxu0 0.0
      %1744 = vmatprep.subr.mxu0 0.0
      %1745 = vmatpush1.msra.mxu0 %v1707
      %1746 = vmatprep.subr.mxu0 0.0
      %1747 = vmatpush1.msra.mxu0 %v1706
      %1748 = vmatprep.subr.mxu0 0.0
      %1749 = vmatpush1.msra.mxu0 %v1705
      %1750 = vmatprep.subr.mxu0 0.0
      %1751 = vmatpush1.msra.mxu0 %v1704
      %1752 = vmatprep.subr.mxu0 0.0
      %1753 = vmatpush2.msra.mxu0 0.0
      %1754 = vmatprep.subr.mxu0 0.0
      %1755 = vmatpush2.msra.mxu0 0.0
      %1756 = vmatprep.subr.mxu0 0.0
      %1757 = vmatpush2.msra.mxu0 0.0
      %1758 = vmatprep.subr.mxu0 0.0
      %1759 = vmatpush2.msra.mxu0 0.0
      %1760 = vmatprep.subr.mxu0 0.0
      %1761 = vmatpush2.msra.mxu0 0.0
      %1762 = vmatprep.subr.mxu0 0.0
      %1763 = vmatpush2.msra.mxu0 0.0
      %1764 = vmatprep.subr.mxu0 0.0
      %1765 = vmatpush2.msra.mxu0 0.0
      %1766 = vmatprep.subr.mxu0 0.0
      %1767 = vmatpush2.msra.mxu0 0.0
      %1768 = vmatprep.subr.mxu0 0.0
      %1769 = vmatpush2.msra.mxu0 0.0
      %1770 = vmatprep.subr.mxu0 0.0
      %1771 = vmatpush2.msra.mxu0 0.0
      %1772 = vmatprep.subr.mxu0 0.0
      %1773 = vmatpush2.msra.mxu0 0.0
      %1774 = vmatprep.subr.mxu0 0.0
      %1775 = vmatpush2.msra.mxu0 0.0
      %1776 = vmatprep.subr.mxu0 0.0
      %1777 = vmatpush2.msra.mxu0 0.0
      %1778 = vmatprep.subr.mxu0 0.0
      %1779 = vmatpush2.msra.mxu0 0.0
      %1780 = vmatprep.subr.mxu0 0.0
      %1781 = vmatpush2.msra.mxu0 0.0
      %1782 = vmatprep.subr.mxu0 0.0
      %1783 = vmatpush2.msra.mxu0 0.0
      %1784 = vmatprep.mubr.f32.mxu0 0.0
      %1785 = vmatmul.mubr.f32.gmra.mxu0 %v1709
      %v1786 = vpop.f32.mrf.mxu0
      %v1787 = vadd.f32 0.0, %v1786
      %v1788 = vpop.f32.mrf.mxu0
      %1789 = vmatprep.mubr.f32.mxu0 0.0
      %1790 = vmatmul.mubr.f32.gmra.mxu0 %v1712
      %v1791 = vpop.f32.mrf.mxu0
      %v1792 = vadd.f32 0.0, %v1791
      %v1793 = vpop.f32.mrf.mxu0
      %1794 = vmatprep.mubr.f32.mxu0 0.0
      %1795 = vmatmul.mubr.f32.gmra.mxu0 %v1715
      %v1796 = vpop.f32.mrf.mxu0
      %v1797 = vadd.f32 0.0, %v1796
      %v1798 = vpop.f32.mrf.mxu0
      %1799 = vmatprep.mubr.f32.mxu0 0.0
      %1800 = vmatmul.mubr.f32.gmra.mxu0 %v1718
      %v1801 = vpop.f32.mrf.mxu0
      %v1802 = vadd.f32 0.0, %v1801
      %v1803 = vpop.f32.mrf.mxu0
      %1804 = vdwg.mxu0
      %1805 = vst.msk [vmem:[%s253] sm:$0xff] %vm283, %v1787
      %1806 = vst.msk [vmem:[%s253 + $0x8] sm:$0xff] %vm283, %v1792
      %1807 = vst.msk [vmem:[%s253 + $0x10] sm:$0xff] %vm283, %v1797
      %1808 = vst.msk [vmem:[%s253 + $0x18] sm:$0xff] %vm283, %v1802
      %s1809 = smul.u32 4, %s17
      %p1810 = scmp.lt.s32.totalorder %s1809, 7
      %s1811 = scalar_select %p1810, %s1809, 7
      %s1812 = smul.addr %s1811, 8
      %s1813 = scalar_lea.vmem %s6, %s1812
      // Predicated region
      $region45: #{tpu_custom_call.1} parent=43 // pred_check
        %p1814 = pneg %p166
      $region46: #{tpu_custom_call.1} parent=43 // pred_check_branch
        %1816 = sbr.rel (%p1814) target = $region48
      $region47: #{tpu_custom_call.1} parent=43 // pred_region
        %s1817 = smul.u32 4, %s17
      $region48: #{tpu_custom_call.1} parent=43 // pred_fallthru
        _
    $region44: #{tpu_custom_call.1} parent=5 // pred_fallthru
      _
    %p1818 = scmp.le.s32.totalorder 2, %s12
    // Predicated region
    $region49: #{tpu_custom_call.1} parent=5 // pred_check
      %p1819 = pneg %p1818
    $region50: #{tpu_custom_call.1} parent=5 // pred_check_branch
      %1821 = sbr.rel (%p1819) target = $region52
    $region51: #{tpu_custom_call.1} parent=5 // pred_region
      %s1822 = ssub.s32 %s12, 2
      // Predicated region
      $region53: #{tpu_custom_call.1} parent=51 // pred_check
        %p1823 = pneg %p172
      $region54: #{tpu_custom_call.1} parent=51 // pred_check_branch
        %1825 = sbr.rel (%p1823) target = $region56
      $region55: #{tpu_custom_call.1} parent=51 // pred_region
        %s1826 = smul.u32 4, %s18
        %p1827 = scmp.lt.s32.totalorder %s1826, 7
        %s1828 = scalar_select %p1827, %s1826, 7
        %s1829 = smul.addr %s1828, 8
        %s1830 = scalar_lea.vmem %s6, %s1829
      $region56: #{tpu_custom_call.1} parent=51 // pred_fallthru
        _
    $region52: #{tpu_custom_call.1} parent=5 // pred_fallthru
      _
  $region6: #{tpu_custom_call.1} parent=0 // loop_footer
    %s16 = sadd.s32 1, %s12
  $region7: #{tpu_custom_call.1} parent=0 // loop_footer_branch
    %11 = sbr.rel target = $region3
  $region8: #{tpu_custom_call.1} parent=0 // loop_exit
    _

</llo_original>
